<compile_context>
chip_gen: v7x
topology: tpu7x:2x2x1
jax: 0.10.0
libtpu: 0.0.40
codegen_flags: <defaults>
</compile_context>

<pallas_src>
import functools
import math

import jax
import jax.numpy as jnp
from jax.experimental import pallas as pl
from jax.experimental.pallas import tpu as pltpu

_INV_SQRT2 = 0.7071067811865476
_SQRT_2_OVER_PI = 0.7978845608028654


def _gelu(x, approximate):
    if approximate:
        # tanh approximation -> EUP slot; stays in the compute dtype (bf16 on v6e/v7x).
        return 0.5 * x * (1.0 + jnp.tanh(_SQRT_2_OVER_PI * (x + 0.044715 * (x * x * x))))
    # Exact erf GELU (PyTorch default), computed in f32 for fidelity.
    x32 = x.astype(jnp.float32)
    y = 0.5 * x32 * (1.0 + jax.lax.erf(x32 * _INV_SQRT2))
    return y.astype(x.dtype)


def _round_up(x, m):
    return (x + m - 1) // m * m


def _rws_pairwise_kernel(hsT_ref, htT_ref, w_ref, out_ref, *, h_chunk, approximate_gelu):
    """Pairwise GELU + weighted H-reduction for one (batch, relation, src-tile, tgt-tile).

    hsT_ref : (H, ts)   source projection tile, features on sublanes, src rows on lanes
    htT_ref : (H, tt)   target projection tile, features on sublanes, tt lane-dense (>=128)
    w_ref   : (1, H)    classifier weights for this relation
    out_ref : (ts, tt)  output block (src rows on sublanes, tgt positions on lanes)
    """
    H, ts = hsT_ref.shape
    tt = htT_ref.shape[1]

    # One f32 row accumulator per source position in this tile (ts*tt*4 B total).
    accs = [jnp.zeros((1, tt), jnp.float32) for _ in range(ts)]

    # Chunk over H so the target chunk (h_chunk, tt) stays small (streams through vld slots
    # instead of hoisting the whole target tile into registers / spilling).
    for h0 in range(0, H, h_chunk):
        hc = min(h_chunk, H - h0)
        ht_c = htT_ref[h0:h0 + hc, :]          # (hc, tt)
        hs_c = hsT_ref[h0:h0 + hc, :]          # (hc, ts)
        w_c = w_ref[:, h0:h0 + hc]             # (1, hc)
        for s in range(ts):                    # static unroll over source rows
            # (hc, 1) source column broadcast across tt lanes -> (hc, tt)
            pair = hs_c[:, s:s + 1] + ht_c
            act = _gelu(pair, approximate_gelu)          # dropout == identity (inference)
            # Weighted reduction over the H chunk on the MXU, f32 accumulation.
            accs[s] = accs[s] + jnp.dot(w_c, act, preferred_element_type=jnp.float32)

    # Direct, lane-dense row stores (no concatenate / relayout in the epilogue).
    for s in range(ts):
        out_ref[s:s + 1, :] = accs[s].astype(out_ref.dtype)


def relation_wise_word_selection_head(pooled, w_source, b_source, w_target, b_target,
                                      classifier_weight, *, src_tile=16, tgt_tile=512,
                                      approximate_gelu=True, compute_dtype=jnp.bfloat16,
                                      native_layout=False):
    """pooled: (B, S, H); Linear weights in PyTorch layout (R*H, H); biases (R*H,);
    classifier_weight (H, R).

    Returns (B, S, S, R) f32 (PyTorch layout), or the kernel-native lane-dense
    (B, R, S, S) layout when native_layout=True (skips one HBM transpose pass).
    On v5e pass compute_dtype=jnp.float32 (no bf16 VALU/EUP there).
    """
    assert src_tile % 8 == 0 and tgt_tile % 128 == 0
    B, S, H = pooled.shape
    RH = w_source.shape[0]
    R = RH // H
    cdt = jnp.dtype(compute_dtype)
    itemsize = cdt.itemsize
    f32 = jnp.float32

    # ---- Tile selection -----------------------------------------------------------------
    ts = min(src_tile, _round_up(S, 8))          # multiple of 8
    tt = min(tgt_tile, _round_up(S, 128))        # multiple of 128, lane-dense stores
    S_src = _round_up(S, ts)
    S_tgt = _round_up(S, tt)
    n_src, n_tgt = S_src // ts, S_tgt // tt
    # H chunk sized so an (h_chunk, tt) target chunk is ~64 KiB (register friendly).
    h_chunk = min(H, max(8, ((64 * 1024) // (tt * itemsize)) // 8 * 8))

    # ---- Projections as plain XLA GEMMs (weights never enter kernel VMEM) ----------------
    x = pooled.astype(cdt)
    ws3 = w_source.reshape(R, H, H).astype(cdt)      # [r, h_out, k_in]
    wt3 = w_target.reshape(R, H, H).astype(cdt)
    bs2 = b_source.reshape(R, H).astype(f32)
    bt2 = b_target.reshape(R, H).astype(f32)

    # Target projection directly in transposed (features-on-sublanes) layout: (B, R, H, S).
    htT = jnp.einsum('btk,rhk->brht', x, wt3,
                     preferred_element_type=f32) + bt2[None, :, :, None]
    htT = jnp.pad(htT, ((0, 0), (0, 0), (0, 0), (0, S_tgt - S))).astype(cdt)

    # Source projection also emitted directly as (B, R, H, S); only the src-row axis is then
    # split into ts-wide lane groups so each block's trailing dims equal full array dims
    # (keeps the (8,128) block rule satisfied for any ts).  No minor-dim transpose pass.
    hsT = jnp.einsum('bsk,rhk->brhs', x, ws3,
                     preferred_element_type=f32) + bs2[None, :, :, None]
    hsT = jnp.pad(hsT, ((0, 0), (0, 0), (0, 0), (0, S_src - S))).astype(cdt)
    hsT = jnp.transpose(hsT.reshape(B, R, H, n_src, ts), (0, 1, 3, 2, 4))  # (B,R,n_src,H,ts)

    # Classifier weights per relation as (R, 1, H) rows.
    cw = jnp.transpose(classifier_weight).reshape(R, 1, H).astype(cdt)

    kernel = functools.partial(_rws_pairwise_kernel, h_chunk=h_chunk,
                               approximate_gelu=approximate_gelu)

    out_native = pl.pallas_call(
        kernel,
        grid=(B, R, n_src, n_tgt),
        in_specs=[
            pl.BlockSpec((None, None, None, H, ts), lambda b, l, si, ti: (b, l, si, 0, 0)),
            pl.BlockSpec((None, None, H, tt), lambda b, l, si, ti: (b, l, 0, ti)),
            pl.BlockSpec((None, 1, H), lambda b, l, si, ti: (l, 0, 0)),
        ],
        out_specs=pl.BlockSpec((None, None, ts, tt), lambda b, l, si, ti: (b, l, si, ti)),
        out_shape=jax.ShapeDtypeStruct((B, R, S_src, S_tgt), f32),
        compiler_params=pltpu.CompilerParams(
            dimension_semantics=("parallel", "parallel", "parallel", "parallel"),
            vmem_limit_bytes=32 * 1024 * 1024),
    )(hsT, htT, cw)

    out_native = out_native[:, :, :S, :S]            # drop padded src/tgt rows (undefined)
    if native_layout:
        return out_native                            # (B, R, S, S), lane-dense
    # PyTorch layout (B, S_src, S_tgt, R).  Prefer native_layout=True downstream.
    return jnp.transpose(out_native, (0, 2, 3, 1))


def _reference(pooled, w_source, b_source, w_target, b_target, classifier_weight):
    B, S, H = pooled.shape
    R = w_source.shape[0] // H
    hs = (pooled @ w_source.T + b_source).reshape(B, S, R, H)
    ht = (pooled @ w_target.T + b_target).reshape(B, S, R, H)
    hidden = _gelu(hs[:, :, None, :, :] + ht[:, None, :, :, :], False)   # exact erf GELU
    return jnp.einsum('bstlh,hl->bstl', hidden, classifier_weight)


if __name__ == "__main__":
    # Small shapes consistent with the module's forward.
    B, S, H, R = 2, 8, 32, 4

    key = jax.random.PRNGKey(0)
    k_x, k_ws, k_bs, k_wt, k_bt, k_cw = jax.random.split(key, 6)

    lin_bound = 1.0 / math.sqrt(H)
    pooled = jax.random.normal(k_x, (B, S, H), dtype=jnp.float32)
    w_source = jax.random.uniform(k_ws, (R * H, H), jnp.float32, -lin_bound, lin_bound)
    b_source = jax.random.uniform(k_bs, (R * H,), jnp.float32, -lin_bound, lin_bound)
    w_target = jax.random.uniform(k_wt, (R * H, H), jnp.float32, -lin_bound, lin_bound)
    b_target = jax.random.uniform(k_bt, (R * H,), jnp.float32, -lin_bound, lin_bound)
    cls_bound = 1.0 / math.sqrt(R)
    classifier_weight = jax.random.uniform(k_cw, (H, R), jnp.float32, -cls_bound, cls_bound)

    ref = _reference(pooled, w_source, b_source, w_target, b_target, classifier_weight)

    # 1) Exact-GELU f32 path: must match the PyTorch-equivalent reference tightly.
    out_f32 = relation_wise_word_selection_head(
        pooled, w_source, b_source, w_target, b_target, classifier_weight,
        approximate_gelu=False, compute_dtype=jnp.float32)
    out_f32 = jax.block_until_ready(out_f32)
    assert out_f32.shape == (B, S, S, R), out_f32.shape
    assert jnp.allclose(out_f32, ref, rtol=1e-3, atol=1e-3), \
        float(jnp.max(jnp.abs(out_f32 - ref)))

    # 2) Production config (bf16 elementwise + tanh GELU on EUP): sanity check only
    #    (numerics deviate slightly from the exact-erf f32 reference by design).
    out_fast = relation_wise_word_selection_head(
        pooled, w_source, b_source, w_target, b_target, classifier_weight)
    out_fast = jax.block_until_ready(out_fast)
    assert out_fast.shape == (B, S, S, R), out_fast.shape
    assert bool(jnp.isfinite(out_fast).all())
    assert float(jnp.max(jnp.abs(out_fast.astype(jnp.float32) - ref))) < 0.2

    print("KERNEL_OK")
</pallas_src>

<mosaic_0001>
module attributes {stable_mosaic.version = 11 : i64} {
  func.func @_rws_pairwise_kernel(%arg0: i32, %arg1: i32, %arg2: i32, %arg3: i32, %arg4: memref<1x1x1x32x8xf32, #tpu.memory_space<vmem>>, %arg5: memref<1x1x32x128xf32, #tpu.memory_space<vmem>>, %arg6: memref<1x1x32xf32, #tpu.memory_space<vmem>>, %arg7: memref<1x1x8x128xf32, #tpu.memory_space<vmem>>) attributes {dimension_semantics = [#tpu.dimension_semantics<parallel>, #tpu.dimension_semantics<parallel>, #tpu.dimension_semantics<parallel>, #tpu.dimension_semantics<parallel>], iteration_bounds = array<i64: 2, 4, 1, 1>, scalar_prefetch = 0 : i64, scratch_operands = 0 : i64, tpu.core_type = #tpu.core_type<tc>, window_params = [{transform_indices = @transform_0, window_bounds = array<i64: 1, 1, 1, 32, 8>}, {transform_indices = @transform_1, window_bounds = array<i64: 1, 1, 32, 128>}, {transform_indices = @transform_2, window_bounds = array<i64: 1, 1, 32>}, {transform_indices = @transform_3, window_bounds = array<i64: 1, 1, 8, 128>}]} {
    %cst = arith.constant 0.000000e+00 : f32
    %0 = vector.broadcast %cst : f32 to vector<1x128xf32>
    %cst_0 = arith.constant 0.000000e+00 : f32
    %1 = vector.broadcast %cst_0 : f32 to vector<1x128xf32>
    %cst_1 = arith.constant 0.000000e+00 : f32
    %2 = vector.broadcast %cst_1 : f32 to vector<1x128xf32>
    %cst_2 = arith.constant 0.000000e+00 : f32
    %3 = vector.broadcast %cst_2 : f32 to vector<1x128xf32>
    %cst_3 = arith.constant 0.000000e+00 : f32
    %4 = vector.broadcast %cst_3 : f32 to vector<1x128xf32>
    %cst_4 = arith.constant 0.000000e+00 : f32
    %5 = vector.broadcast %cst_4 : f32 to vector<1x128xf32>
    %cst_5 = arith.constant 0.000000e+00 : f32
    %6 = vector.broadcast %cst_5 : f32 to vector<1x128xf32>
    %cst_6 = arith.constant 0.000000e+00 : f32
    %7 = vector.broadcast %cst_6 : f32 to vector<1x128xf32>
    %c0 = arith.constant 0 : index
    %c0_7 = arith.constant 0 : index
    %c0_8 = arith.constant 0 : index
    %c0_9 = arith.constant 0 : index
    %8 = vector.load %arg5[%c0, %c0_7, %c0_8, %c0_9] : memref<1x1x32x128xf32, #tpu.memory_space<vmem>>, vector<1x1x32x128xf32>
    %9 = vector.shape_cast %8 : vector<1x1x32x128xf32> to vector<32x128xf32>
    %c0_10 = arith.constant 0 : index
    %c0_11 = arith.constant 0 : index
    %c0_12 = arith.constant 0 : index
    %c0_13 = arith.constant 0 : index
    %c0_14 = arith.constant 0 : index
    %10 = vector.load %arg4[%c0_10, %c0_11, %c0_12, %c0_13, %c0_14] : memref<1x1x1x32x8xf32, #tpu.memory_space<vmem>>, vector<1x1x1x32x8xf32>
    %11 = vector.shape_cast %10 : vector<1x1x1x32x8xf32> to vector<32x8xf32>
    %c0_15 = arith.constant 0 : index
    %c0_16 = arith.constant 0 : index
    %c0_17 = arith.constant 0 : index
    %12 = vector.load %arg6[%c0_15, %c0_16, %c0_17] : memref<1x1x32xf32, #tpu.memory_space<vmem>>, vector<1x1x32xf32>
    %13 = vector.shape_cast %12 : vector<1x1x32xf32> to vector<1x32xf32>
    %14 = vector.extract_strided_slice %11 {offsets = [0, 0], sizes = [32, 1], strides = [1, 1]} : vector<32x8xf32> to vector<32x1xf32>
    %15 = vector.broadcast %14 : vector<32x1xf32> to vector<32x128xf32>
    %16 = arith.addf %15, %9 : vector<32x128xf32>
    %cst_18 = arith.constant 5.000000e-01 : f32
    %17 = vector.broadcast %cst_18 : f32 to vector<32x128xf32>
    %18 = arith.mulf %17, %16 : vector<32x128xf32>
    %cst_19 = arith.constant 0.707106769 : f32
    %19 = vector.broadcast %cst_19 : f32 to vector<32x128xf32>
    %20 = arith.mulf %16, %19 : vector<32x128xf32>
    %21 = math.erf %20 : vector<32x128xf32>
    %cst_20 = arith.constant 1.000000e+00 : f32
    %22 = vector.broadcast %cst_20 : f32 to vector<32x128xf32>
    %23 = arith.addf %22, %21 : vector<32x128xf32>
    %24 = arith.mulf %18, %23 : vector<32x128xf32>
    %cst_21 = arith.constant dense<0.000000e+00> : vector<1x128xf32>
    %25 = tpu.matmul %13, %24, %cst_21 {dimension_numbers = #tpu.dot_dimension_numbers<[1], [0], [0], [1], [0, 0, 1, 1], [], []>} : vector<1x32xf32>, vector<32x128xf32>, vector<1x128xf32> -> vector<1x128xf32>
    %26 = arith.addf %0, %25 : vector<1x128xf32>
    %27 = vector.extract_strided_slice %11 {offsets = [0, 1], sizes = [32, 1], strides = [1, 1]} : vector<32x8xf32> to vector<32x1xf32>
    %28 = vector.broadcast %27 : vector<32x1xf32> to vector<32x128xf32>
    %29 = arith.addf %28, %9 : vector<32x128xf32>
    %cst_22 = arith.constant 5.000000e-01 : f32
    %30 = vector.broadcast %cst_22 : f32 to vector<32x128xf32>
    %31 = arith.mulf %30, %29 : vector<32x128xf32>
    %cst_23 = arith.constant 0.707106769 : f32
    %32 = vector.broadcast %cst_23 : f32 to vector<32x128xf32>
    %33 = arith.mulf %29, %32 : vector<32x128xf32>
    %34 = math.erf %33 : vector<32x128xf32>
    %cst_24 = arith.constant 1.000000e+00 : f32
    %35 = vector.broadcast %cst_24 : f32 to vector<32x128xf32>
    %36 = arith.addf %35, %34 : vector<32x128xf32>
    %37 = arith.mulf %31, %36 : vector<32x128xf32>
    %cst_25 = arith.constant dense<0.000000e+00> : vector<1x128xf32>
    %38 = tpu.matmul %13, %37, %cst_25 {dimension_numbers = #tpu.dot_dimension_numbers<[1], [0], [0], [1], [0, 0, 1, 1], [], []>} : vector<1x32xf32>, vector<32x128xf32>, vector<1x128xf32> -> vector<1x128xf32>
    %39 = arith.addf %1, %38 : vector<1x128xf32>
    %40 = vector.extract_strided_slice %11 {offsets = [0, 2], sizes = [32, 1], strides = [1, 1]} : vector<32x8xf32> to vector<32x1xf32>
    %41 = vector.broadcast %40 : vector<32x1xf32> to vector<32x128xf32>
    %42 = arith.addf %41, %9 : vector<32x128xf32>
    %cst_26 = arith.constant 5.000000e-01 : f32
    %43 = vector.broadcast %cst_26 : f32 to vector<32x128xf32>
    %44 = arith.mulf %43, %42 : vector<32x128xf32>
    %cst_27 = arith.constant 0.707106769 : f32
    %45 = vector.broadcast %cst_27 : f32 to vector<32x128xf32>
    %46 = arith.mulf %42, %45 : vector<32x128xf32>
    %47 = math.erf %46 : vector<32x128xf32>
    %cst_28 = arith.constant 1.000000e+00 : f32
    %48 = vector.broadcast %cst_28 : f32 to vector<32x128xf32>
    %49 = arith.addf %48, %47 : vector<32x128xf32>
    %50 = arith.mulf %44, %49 : vector<32x128xf32>
    %cst_29 = arith.constant dense<0.000000e+00> : vector<1x128xf32>
    %51 = tpu.matmul %13, %50, %cst_29 {dimension_numbers = #tpu.dot_dimension_numbers<[1], [0], [0], [1], [0, 0, 1, 1], [], []>} : vector<1x32xf32>, vector<32x128xf32>, vector<1x128xf32> -> vector<1x128xf32>
    %52 = arith.addf %2, %51 : vector<1x128xf32>
    %53 = vector.extract_strided_slice %11 {offsets = [0, 3], sizes = [32, 1], strides = [1, 1]} : vector<32x8xf32> to vector<32x1xf32>
    %54 = vector.broadcast %53 : vector<32x1xf32> to vector<32x128xf32>
    %55 = arith.addf %54, %9 : vector<32x128xf32>
    %cst_30 = arith.constant 5.000000e-01 : f32
    %56 = vector.broadcast %cst_30 : f32 to vector<32x128xf32>
    %57 = arith.mulf %56, %55 : vector<32x128xf32>
    %cst_31 = arith.constant 0.707106769 : f32
    %58 = vector.broadcast %cst_31 : f32 to vector<32x128xf32>
    %59 = arith.mulf %55, %58 : vector<32x128xf32>
    %60 = math.erf %59 : vector<32x128xf32>
    %cst_32 = arith.constant 1.000000e+00 : f32
    %61 = vector.broadcast %cst_32 : f32 to vector<32x128xf32>
    %62 = arith.addf %61, %60 : vector<32x128xf32>
    %63 = arith.mulf %57, %62 : vector<32x128xf32>
    %cst_33 = arith.constant dense<0.000000e+00> : vector<1x128xf32>
    %64 = tpu.matmul %13, %63, %cst_33 {dimension_numbers = #tpu.dot_dimension_numbers<[1], [0], [0], [1], [0, 0, 1, 1], [], []>} : vector<1x32xf32>, vector<32x128xf32>, vector<1x128xf32> -> vector<1x128xf32>
    %65 = arith.addf %3, %64 : vector<1x128xf32>
    %66 = vector.extract_strided_slice %11 {offsets = [0, 4], sizes = [32, 1], strides = [1, 1]} : vector<32x8xf32> to vector<32x1xf32>
    %67 = vector.broadcast %66 : vector<32x1xf32> to vector<32x128xf32>
    %68 = arith.addf %67, %9 : vector<32x128xf32>
    %cst_34 = arith.constant 5.000000e-01 : f32
    %69 = vector.broadcast %cst_34 : f32 to vector<32x128xf32>
    %70 = arith.mulf %69, %68 : vector<32x128xf32>
    %cst_35 = arith.constant 0.707106769 : f32
    %71 = vector.broadcast %cst_35 : f32 to vector<32x128xf32>
    %72 = arith.mulf %68, %71 : vector<32x128xf32>
    %73 = math.erf %72 : vector<32x128xf32>
    %cst_36 = arith.constant 1.000000e+00 : f32
    %74 = vector.broadcast %cst_36 : f32 to vector<32x128xf32>
    %75 = arith.addf %74, %73 : vector<32x128xf32>
    %76 = arith.mulf %70, %75 : vector<32x128xf32>
    %cst_37 = arith.constant dense<0.000000e+00> : vector<1x128xf32>
    %77 = tpu.matmul %13, %76, %cst_37 {dimension_numbers = #tpu.dot_dimension_numbers<[1], [0], [0], [1], [0, 0, 1, 1], [], []>} : vector<1x32xf32>, vector<32x128xf32>, vector<1x128xf32> -> vector<1x128xf32>
    %78 = arith.addf %4, %77 : vector<1x128xf32>
    %79 = vector.extract_strided_slice %11 {offsets = [0, 5], sizes = [32, 1], strides = [1, 1]} : vector<32x8xf32> to vector<32x1xf32>
    %80 = vector.broadcast %79 : vector<32x1xf32> to vector<32x128xf32>
    %81 = arith.addf %80, %9 : vector<32x128xf32>
    %cst_38 = arith.constant 5.000000e-01 : f32
    %82 = vector.broadcast %cst_38 : f32 to vector<32x128xf32>
    %83 = arith.mulf %82, %81 : vector<32x128xf32>
    %cst_39 = arith.constant 0.707106769 : f32
    %84 = vector.broadcast %cst_39 : f32 to vector<32x128xf32>
    %85 = arith.mulf %81, %84 : vector<32x128xf32>
    %86 = math.erf %85 : vector<32x128xf32>
    %cst_40 = arith.constant 1.000000e+00 : f32
    %87 = vector.broadcast %cst_40 : f32 to vector<32x128xf32>
    %88 = arith.addf %87, %86 : vector<32x128xf32>
    %89 = arith.mulf %83, %88 : vector<32x128xf32>
    %cst_41 = arith.constant dense<0.000000e+00> : vector<1x128xf32>
    %90 = tpu.matmul %13, %89, %cst_41 {dimension_numbers = #tpu.dot_dimension_numbers<[1], [0], [0], [1], [0, 0, 1, 1], [], []>} : vector<1x32xf32>, vector<32x128xf32>, vector<1x128xf32> -> vector<1x128xf32>
    %91 = arith.addf %5, %90 : vector<1x128xf32>
    %92 = vector.extract_strided_slice %11 {offsets = [0, 6], sizes = [32, 1], strides = [1, 1]} : vector<32x8xf32> to vector<32x1xf32>
    %93 = vector.broadcast %92 : vector<32x1xf32> to vector<32x128xf32>
    %94 = arith.addf %93, %9 : vector<32x128xf32>
    %cst_42 = arith.constant 5.000000e-01 : f32
    %95 = vector.broadcast %cst_42 : f32 to vector<32x128xf32>
    %96 = arith.mulf %95, %94 : vector<32x128xf32>
    %cst_43 = arith.constant 0.707106769 : f32
    %97 = vector.broadcast %cst_43 : f32 to vector<32x128xf32>
    %98 = arith.mulf %94, %97 : vector<32x128xf32>
    %99 = math.erf %98 : vector<32x128xf32>
    %cst_44 = arith.constant 1.000000e+00 : f32
    %100 = vector.broadcast %cst_44 : f32 to vector<32x128xf32>
    %101 = arith.addf %100, %99 : vector<32x128xf32>
    %102 = arith.mulf %96, %101 : vector<32x128xf32>
    %cst_45 = arith.constant dense<0.000000e+00> : vector<1x128xf32>
    %103 = tpu.matmul %13, %102, %cst_45 {dimension_numbers = #tpu.dot_dimension_numbers<[1], [0], [0], [1], [0, 0, 1, 1], [], []>} : vector<1x32xf32>, vector<32x128xf32>, vector<1x128xf32> -> vector<1x128xf32>
    %104 = arith.addf %6, %103 : vector<1x128xf32>
    %105 = vector.extract_strided_slice %11 {offsets = [0, 7], sizes = [32, 1], strides = [1, 1]} : vector<32x8xf32> to vector<32x1xf32>
    %106 = vector.broadcast %105 : vector<32x1xf32> to vector<32x128xf32>
    %107 = arith.addf %106, %9 : vector<32x128xf32>
    %cst_46 = arith.constant 5.000000e-01 : f32
    %108 = vector.broadcast %cst_46 : f32 to vector<32x128xf32>
    %109 = arith.mulf %108, %107 : vector<32x128xf32>
    %cst_47 = arith.constant 0.707106769 : f32
    %110 = vector.broadcast %cst_47 : f32 to vector<32x128xf32>
    %111 = arith.mulf %107, %110 : vector<32x128xf32>
    %112 = math.erf %111 : vector<32x128xf32>
    %cst_48 = arith.constant 1.000000e+00 : f32
    %113 = vector.broadcast %cst_48 : f32 to vector<32x128xf32>
    %114 = arith.addf %113, %112 : vector<32x128xf32>
    %115 = arith.mulf %109, %114 : vector<32x128xf32>
    %cst_49 = arith.constant dense<0.000000e+00> : vector<1x128xf32>
    %116 = tpu.matmul %13, %115, %cst_49 {dimension_numbers = #tpu.dot_dimension_numbers<[1], [0], [0], [1], [0, 0, 1, 1], [], []>} : vector<1x32xf32>, vector<32x128xf32>, vector<1x128xf32> -> vector<1x128xf32>
    %117 = arith.addf %7, %116 : vector<1x128xf32>
    %c0_50 = arith.constant 0 : index
    %c0_51 = arith.constant 0 : index
    %c0_52 = arith.constant 0 : index
    %c0_53 = arith.constant 0 : index
    %118 = vector.load %arg7[%c0_50, %c0_51, %c0_52, %c0_53] : memref<1x1x8x128xf32, #tpu.memory_space<vmem>>, vector<1x1x1x128xf32>
    %119 = vector.shape_cast %118 : vector<1x1x1x128xf32> to vector<1x128xf32>
    %120 = vector.shape_cast %26 : vector<1x128xf32> to vector<1x1x1x128xf32>
    tpu.vector_store %arg7[%c0_50, %c0_51, %c0_52, %c0_53], %120 {strides = array<i32>} : memref<1x1x8x128xf32, #tpu.memory_space<vmem>>, vector<1x1x1x128xf32>,
    %c0_54 = arith.constant 0 : index
    %c0_55 = arith.constant 0 : index
    %c1 = arith.constant 1 : index
    %c0_56 = arith.constant 0 : index
    %121 = vector.load %arg7[%c0_54, %c0_55, %c1, %c0_56] : memref<1x1x8x128xf32, #tpu.memory_space<vmem>>, vector<1x1x1x128xf32>
    %122 = vector.shape_cast %121 : vector<1x1x1x128xf32> to vector<1x128xf32>
    %123 = vector.shape_cast %39 : vector<1x128xf32> to vector<1x1x1x128xf32>
    tpu.vector_store %arg7[%c0_54, %c0_55, %c1, %c0_56], %123 {strides = array<i32>} : memref<1x1x8x128xf32, #tpu.memory_space<vmem>>, vector<1x1x1x128xf32>,
    %c0_57 = arith.constant 0 : index
    %c0_58 = arith.constant 0 : index
    %c2 = arith.constant 2 : index
    %c0_59 = arith.constant 0 : index
    %124 = vector.load %arg7[%c0_57, %c0_58, %c2, %c0_59] : memref<1x1x8x128xf32, #tpu.memory_space<vmem>>, vector<1x1x1x128xf32>
    %125 = vector.shape_cast %124 : vector<1x1x1x128xf32> to vector<1x128xf32>
    %126 = vector.shape_cast %52 : vector<1x128xf32> to vector<1x1x1x128xf32>
    tpu.vector_store %arg7[%c0_57, %c0_58, %c2, %c0_59], %126 {strides = array<i32>} : memref<1x1x8x128xf32, #tpu.memory_space<vmem>>, vector<1x1x1x128xf32>,
    %c0_60 = arith.constant 0 : index
    %c0_61 = arith.constant 0 : index
    %c3 = arith.constant 3 : index
    %c0_62 = arith.constant 0 : index
    %127 = vector.load %arg7[%c0_60, %c0_61, %c3, %c0_62] : memref<1x1x8x128xf32, #tpu.memory_space<vmem>>, vector<1x1x1x128xf32>
    %128 = vector.shape_cast %127 : vector<1x1x1x128xf32> to vector<1x128xf32>
    %129 = vector.shape_cast %65 : vector<1x128xf32> to vector<1x1x1x128xf32>
    tpu.vector_store %arg7[%c0_60, %c0_61, %c3, %c0_62], %129 {strides = array<i32>} : memref<1x1x8x128xf32, #tpu.memory_space<vmem>>, vector<1x1x1x128xf32>,
    %c0_63 = arith.constant 0 : index
    %c0_64 = arith.constant 0 : index
    %c4 = arith.constant 4 : index
    %c0_65 = arith.constant 0 : index
    %130 = vector.load %arg7[%c0_63, %c0_64, %c4, %c0_65] : memref<1x1x8x128xf32, #tpu.memory_space<vmem>>, vector<1x1x1x128xf32>
    %131 = vector.shape_cast %130 : vector<1x1x1x128xf32> to vector<1x128xf32>
    %132 = vector.shape_cast %78 : vector<1x128xf32> to vector<1x1x1x128xf32>
    tpu.vector_store %arg7[%c0_63, %c0_64, %c4, %c0_65], %132 {strides = array<i32>} : memref<1x1x8x128xf32, #tpu.memory_space<vmem>>, vector<1x1x1x128xf32>,
    %c0_66 = arith.constant 0 : index
    %c0_67 = arith.constant 0 : index
    %c5 = arith.constant 5 : index
    %c0_68 = arith.constant 0 : index
    %133 = vector.load %arg7[%c0_66, %c0_67, %c5, %c0_68] : memref<1x1x8x128xf32, #tpu.memory_space<vmem>>, vector<1x1x1x128xf32>
    %134 = vector.shape_cast %133 : vector<1x1x1x128xf32> to vector<1x128xf32>
    %135 = vector.shape_cast %91 : vector<1x128xf32> to vector<1x1x1x128xf32>
    tpu.vector_store %arg7[%c0_66, %c0_67, %c5, %c0_68], %135 {strides = array<i32>} : memref<1x1x8x128xf32, #tpu.memory_space<vmem>>, vector<1x1x1x128xf32>,
    %c0_69 = arith.constant 0 : index
    %c0_70 = arith.constant 0 : index
    %c6 = arith.constant 6 : index
    %c0_71 = arith.constant 0 : index
    %136 = vector.load %arg7[%c0_69, %c0_70, %c6, %c0_71] : memref<1x1x8x128xf32, #tpu.memory_space<vmem>>, vector<1x1x1x128xf32>
    %137 = vector.shape_cast %136 : vector<1x1x1x128xf32> to vector<1x128xf32>
    %138 = vector.shape_cast %104 : vector<1x128xf32> to vector<1x1x1x128xf32>
    tpu.vector_store %arg7[%c0_69, %c0_70, %c6, %c0_71], %138 {strides = array<i32>} : memref<1x1x8x128xf32, #tpu.memory_space<vmem>>, vector<1x1x1x128xf32>,
    %c0_72 = arith.constant 0 : index
    %c0_73 = arith.constant 0 : index
    %c7 = arith.constant 7 : index
    %c0_74 = arith.constant 0 : index
    %139 = vector.load %arg7[%c0_72, %c0_73, %c7, %c0_74] : memref<1x1x8x128xf32, #tpu.memory_space<vmem>>, vector<1x1x1x128xf32>
    %140 = vector.shape_cast %139 : vector<1x1x1x128xf32> to vector<1x128xf32>
    %141 = vector.shape_cast %117 : vector<1x128xf32> to vector<1x1x1x128xf32>
    tpu.vector_store %arg7[%c0_72, %c0_73, %c7, %c0_74], %141 {strides = array<i32>} : memref<1x1x8x128xf32, #tpu.memory_space<vmem>>, vector<1x1x1x128xf32>,
    return
  }
  func.func @transform_0(%arg0: i32, %arg1: i32, %arg2: i32, %arg3: i32) -> (i32, i32, i32, i32, i32) {
    %c0_i32 = arith.constant 0 : i32
    %c0_i32_0 = arith.constant 0 : i32
    %c0_i32_1 = arith.constant 0 : i32
    return %arg0, %arg1, %arg2, %c0_i32, %c0_i32_0 : i32, i32, i32, i32, i32
  }
  func.func @transform_1(%arg0: i32, %arg1: i32, %arg2: i32, %arg3: i32) -> (i32, i32, i32, i32) {
    %c0_i32 = arith.constant 0 : i32
    %c0_i32_0 = arith.constant 0 : i32
    return %arg0, %arg1, %c0_i32, %arg3 : i32, i32, i32, i32
  }
  func.func @transform_2(%arg0: i32, %arg1: i32, %arg2: i32, %arg3: i32) -> (i32, i32, i32) {
    %c0_i32 = arith.constant 0 : i32
    %c0_i32_0 = arith.constant 0 : i32
    %c0_i32_1 = arith.constant 0 : i32
    return %arg1, %c0_i32, %c0_i32_0 : i32, i32, i32
  }
  func.func @transform_3(%arg0: i32, %arg1: i32, %arg2: i32, %arg3: i32) -> (i32, i32, i32, i32) {
    %c0_i32 = arith.constant 0 : i32
    return %arg0, %arg1, %arg2, %arg3 : i32, i32, i32, i32
  }
}

</mosaic_0001>

<llo_original>
// kernel: tpu_custom_call.1
$region0: #{tpu_custom_call.1}
  #allocation0 [shape = 'u32[]', space=smem, size = 0x4, offset = 0x4, fixed_abs, tag = 'smem constant byte address 0x4 - core index']
  #allocation1 [shape = 'u32[144,128]{1,0:T(1,128)}', space=vmem, size = 0x12000, scoped, tag = 'internal scratch']
  %s0 = inlined_call_operand.vmem [shape: f32[2,4,1,32,8], index: 0, kind: input, shape index: {}]
  %s1 = inlined_call_operand.vmem [shape: f32[2,4,32,128], index: 1, kind: input, shape index: {}]
  %s2 = inlined_call_operand.vmem [shape: f32[4,1,32], index: 2, kind: input, shape index: {}]
  %s3 = inlined_call_operand.hbm [shape: f32[2,4,8,128], index: 3, kind: output, shape index: {}]
  %s4 = sld [smem:[#allocation0]]
  $region45: #{tpu_custom_call.1} parent=0
    _
  %s6 = ssub.s32 1, %s4
  %s7 = scalar_select 0, %s6, %s4
  $region1: #{tpu_custom_call.1} parent=0
    #allocation2 [shape = 'u8[8192]{0}', space=vmem, size = 0x2000, scoped, tag = 'output window, operand 0']
    #allocation3 [shape = 's32[2]{0}', space=sflag, size = 0x8, scoped, tag = 'scoped memory for tpu_custom_call.1']
    %8 = vsyncpa [#allocation3], 0
    %s9 = scalar_lea.sflag [#allocation3], 1
    %10 = vsyncpa %s9, 0
    loop: start=0, step=1, limit=10
    $region2: #{tpu_custom_call.1} parent=1 // loop_pre_header
      _
    $region3: #{tpu_custom_call.1} parent=1 // loop_header
      %s12 = sphi 0, %s16
      %p13 = scmp.ge.s32.totalorder %s12, 10
      %s19 = sphi 0, %s45
      %s20 = sphi 0, %s41
      %s21 = sphi 0, %s37
      %s22 = sphi 0, %s33
      %s23 = sphi 0, %s19
      %s24 = sphi 0, %s20
      %s25 = sphi 0, %s21
      %s26 = sphi 0, %s22
      %s27 = sphi 0, %s23
      %s28 = sphi 0, %s24
      %s29 = sphi 0, %s25
      %s30 = sphi 0, %s26
      %s52 = sphi 0, %s54
      %s55 = sphi 0, %s52
      %s56 = sphi 0, %s55
      %s72 = sphi 0, %s56
      %s82 = sphi 0, %s84
      %s85 = sphi 0, %s82
      %s86 = sphi 0, %s85
      %s102 = sphi 0, %s86
      %s108 = sphi 0, %s110
      %s111 = sphi 0, %s108
      %s112 = sphi 0, %s111
      %s128 = sphi 0, %s112
      %s140 = sphi 0, %s142
      %s143 = sphi 0, %s140
      %s144 = sphi 0, %s143
      %s160 = sphi 0, %s144
    $region4: #{tpu_custom_call.1} parent=1 // loop_header_branch
      %15 = sbr.rel (%p13) target = $region8
    $region5: #{tpu_custom_call.1} parent=1 // loop_body
      %s17 = ssub.s32 %s12, 1
      %s18 = ssub.s32 %s12, 2
      %s31 = sadd.s32 1, %s22
      %p32 = scmp.ge.s32.totalorder %s31, 1
      %s33 = scalar_select %p32, 0, %s31
      %s34 = sadd.s32 1, %s21
      %s35 = scalar_select %p32, %s34, %s21
      %p36 = scmp.ge.s32.totalorder %s35, 1
      %s37 = scalar_select %p36, 0, %s35
      %s38 = sadd.s32 1, %s20
      %s39 = scalar_select %p36, %s38, %s20
      %p40 = scmp.ge.s32.totalorder %s39, 4
      %s41 = scalar_select %p40, 0, %s39
      %s42 = sadd.s32 1, %s19
      %s43 = scalar_select %p40, %s42, %s19
      %p44 = scmp.ge.s32.totalorder %s43, 2
      %s45 = scalar_select %p44, 0, %s43
      %s46 = ssub.s32 %s19, %s45
      %s47 = ssub.s32 %s20, %s41
      %s48 = sor.u32 %s46, %s47
      %s49 = ssub.s32 %s21, %s37
      %s50 = sor.u32 %s48, %s49
      %p51 = scmp.eq.s32.totalorder %s50, 0
      %s53 = sadd.s32 %s52, 1
      %s54 = scalar_select %p51, %s52, %s53
      %p57 = pneg %p51
      %p58 = scmp.eq.s32.totalorder %s12, 7
      %p59 = por %p57, %p58
      %p60 = scmp.ne.s32.totalorder %s52, %s55
      %p61 = scmp.eq.s32.totalorder %s12, 0
      %p62 = por %p60, %p61
      %p63 = scmp.ne.s32.totalorder %s52, %s55
      %p64 = scmp.eq.s32.totalorder %s17, 7
      %p65 = por %p63, %p64
      %p66 = scmp.ne.s32.totalorder %s55, %s56
      %p67 = scmp.eq.s32.totalorder %s17, 0
      %p68 = por %p66, %p67
      %p69 = scmp.ne.s32.totalorder %s55, %s56
      %p70 = scmp.eq.s32.totalorder %s18, 7
      %p71 = por %p69, %p70
      %p73 = scmp.ne.s32.totalorder %s56, %s72
      %p74 = scmp.eq.s32.totalorder %s18, 0
      %p75 = por %p73, %p74
      %s76 = ssub.s32 %s19, %s45
      %s77 = ssub.s32 %s20, %s41
      %s78 = sor.u32 %s76, %s77
      %s79 = ssub.s32 %s22, %s33
      %s80 = sor.u32 %s78, %s79
      %p81 = scmp.eq.s32.totalorder %s80, 0
      %s83 = sadd.s32 %s82, 1
      %s84 = scalar_select %p81, %s82, %s83
      %p87 = pneg %p81
      %p88 = scmp.eq.s32.totalorder %s12, 7
      %p89 = por %p87, %p88
      %p90 = scmp.ne.s32.totalorder %s82, %s85
      %p91 = scmp.eq.s32.totalorder %s12, 0
      %p92 = por %p90, %p91
      %p93 = scmp.ne.s32.totalorder %s82, %s85
      %p94 = scmp.eq.s32.totalorder %s17, 7
      %p95 = por %p93, %p94
      %p96 = scmp.ne.s32.totalorder %s85, %s86
      %p97 = scmp.eq.s32.totalorder %s17, 0
      %p98 = por %p96, %p97
      %p99 = scmp.ne.s32.totalorder %s85, %s86
      %p100 = scmp.eq.s32.totalorder %s18, 7
      %p101 = por %p99, %p100
      %p103 = scmp.ne.s32.totalorder %s86, %s102
      %p104 = scmp.eq.s32.totalorder %s18, 0
      %p105 = por %p103, %p104
      %s106 = ssub.s32 %s20, %s41
      %p107 = scmp.eq.s32.totalorder %s106, 0
      %s109 = sadd.s32 %s108, 1
      %s110 = scalar_select %p107, %s108, %s109
      %p113 = pneg %p107
      %p114 = scmp.eq.s32.totalorder %s12, 7
      %p115 = por %p113, %p114
      %p116 = scmp.ne.s32.totalorder %s108, %s111
      %p117 = scmp.eq.s32.totalorder %s12, 0
      %p118 = por %p116, %p117
      %p119 = scmp.ne.s32.totalorder %s108, %s111
      %p120 = scmp.eq.s32.totalorder %s17, 7
      %p121 = por %p119, %p120
      %p122 = scmp.ne.s32.totalorder %s111, %s112
      %p123 = scmp.eq.s32.totalorder %s17, 0
      %p124 = por %p122, %p123
      %p125 = scmp.ne.s32.totalorder %s111, %s112
      %p126 = scmp.eq.s32.totalorder %s18, 7
      %p127 = por %p125, %p126
      %p129 = scmp.ne.s32.totalorder %s112, %s128
      %p130 = scmp.eq.s32.totalorder %s18, 0
      %p131 = por %p129, %p130
      %s132 = ssub.s32 %s19, %s45
      %s133 = ssub.s32 %s20, %s41
      %s134 = sor.u32 %s132, %s133
      %s135 = ssub.s32 %s21, %s37
      %s136 = sor.u32 %s134, %s135
      %s137 = ssub.s32 %s22, %s33
      %s138 = sor.u32 %s136, %s137
      %p139 = scmp.eq.s32.totalorder %s138, 0
      %s141 = sadd.s32 %s140, 1
      %s142 = scalar_select %p139, %s140, %s141
      %p145 = pneg %p139
      %p146 = scmp.eq.s32.totalorder %s12, 7
      %p147 = por %p145, %p146
      %p148 = scmp.ne.s32.totalorder %s140, %s143
      %p149 = scmp.eq.s32.totalorder %s12, 0
      %p150 = por %p148, %p149
      %p151 = scmp.ne.s32.totalorder %s140, %s143
      %p152 = scmp.eq.s32.totalorder %s17, 7
      %p153 = por %p151, %p152
      %p154 = scmp.ne.s32.totalorder %s143, %s144
      %p155 = scmp.eq.s32.totalorder %s17, 0
      %p156 = por %p154, %p155
      %p157 = scmp.ne.s32.totalorder %s143, %s144
      %p158 = scmp.eq.s32.totalorder %s18, 7
      %p159 = por %p157, %p158
      %p161 = scmp.ne.s32.totalorder %s144, %s160
      %p162 = scmp.eq.s32.totalorder %s18, 0
      %p163 = por %p161, %p162
      %p164 = scmp.le.s32.totalorder 1, %s12
      %p165 = scmp.lt.s32.totalorder %s12, 9
      %p166 = pnand %p164, %p165
      %p167 = pneg %p166
      // Predicated region
      $region9: #{tpu_custom_call.1} parent=5 // pred_check
        _
      $region10: #{tpu_custom_call.1} parent=5 // pred_check_branch
        %169 = sbr.rel (%p166) target = $region12
      $region11: #{tpu_custom_call.1} parent=5 // pred_region
        %s170 = ssub.s32 %s12, 1
      $region12: #{tpu_custom_call.1} parent=5 // pred_fallthru
        _
      %p171 = scmp.lt.s32.totalorder %s12, 8
      // Predicated region
      $region13: #{tpu_custom_call.1} parent=5 // pred_check
        %p172 = pneg %p171
      $region14: #{tpu_custom_call.1} parent=5 // pred_check_branch
        %174 = sbr.rel (%p172) target = $region16
      $region15: #{tpu_custom_call.1} parent=5 // pred_region
        // Predicated region
        $region17: #{tpu_custom_call.1} parent=15 // pred_check
          %p175 = pneg %p62
        $region18: #{tpu_custom_call.1} parent=15 // pred_check_branch
          %177 = sbr.rel (%p175) target = $region20
        $region19: #{tpu_custom_call.1} parent=15 // pred_region
          %p178 = scmp.lt.s32.totalorder %s19, 1
          %s179 = scalar_select %p178, %s19, 1
          %p180 = scmp.lt.s32.totalorder %s20, 3
          %s181 = scalar_select %p180, %s20, 3
          %p182 = scmp.lt.s32.totalorder %s21, 0
          %s183 = scalar_select %p182, %s21, 0
          %s184 = smul.addr %s183, 4
          %s185 = smul.addr %s181, 4
          %s186 = sadd.s32 %s184, %s185
          %s187 = smul.addr %s179, 16
          %s188 = sadd.s32 %s186, %s187
          %s189 = smul.addr %s188, 8
          %s190 = scalar_lea.vmem %s0, %s189
        $region20: #{tpu_custom_call.1} parent=15 // pred_fallthru
          _
        // Predicated region
        $region21: #{tpu_custom_call.1} parent=15 // pred_check
          %p191 = pneg %p92
        $region22: #{tpu_custom_call.1} parent=15 // pred_check_branch
          %193 = sbr.rel (%p191) target = $region24
        $region23: #{tpu_custom_call.1} parent=15 // pred_region
          %p194 = scmp.lt.s32.totalorder %s19, 1
          %s195 = scalar_select %p194, %s19, 1
          %p196 = scmp.lt.s32.totalorder %s20, 3
          %s197 = scalar_select %p196, %s20, 3
          %p198 = scmp.lt.s32.totalorder %s22, 0
          %s199 = scalar_select %p198, %s22, 0
          %s200 = smul.addr %s197, 4
          %s201 = sadd.s32 %s199, %s200
          %s202 = smul.addr %s195, 16
          %s203 = sadd.s32 %s201, %s202
          %s204 = smul.addr %s203, 8
          %s205 = scalar_lea.vmem %s1, %s204
        $region24: #{tpu_custom_call.1} parent=15 // pred_fallthru
          _
        // Predicated region
        $region25: #{tpu_custom_call.1} parent=15 // pred_check
          %p206 = pneg %p118
        $region26: #{tpu_custom_call.1} parent=15 // pred_check_branch
          %208 = sbr.rel (%p206) target = $region28
        $region27: #{tpu_custom_call.1} parent=15 // pred_region
          %p209 = scmp.lt.s32.totalorder %s20, 3
          %s210 = scalar_select %p209, %s20, 3
          %s211 = scalar_lea.vmem %s2, %s210
        $region28: #{tpu_custom_call.1} parent=15 // pred_fallthru
          _
      $region16: #{tpu_custom_call.1} parent=5 // pred_fallthru
        _
      %p212 = scmp.le.s32.totalorder 1, %s12
      %p213 = scmp.lt.s32.totalorder %s12, 9
      %p214 = pnand %p212, %p213
      %p215 = pneg %p214
      // Predicated region
      $region29: #{tpu_custom_call.1} parent=5 // pred_check
        _
      $region30: #{tpu_custom_call.1} parent=5 // pred_check_branch
        %217 = sbr.rel (%p214) target = $region32
      $region31: #{tpu_custom_call.1} parent=5 // pred_region
        %s218 = ssub.s32 %s12, 1
        %p219 = scmp.lt.s32.totalorder %s23, 1
        %s220 = scalar_select %p219, %s23, 1
        %p221 = scmp.lt.s32.totalorder %s24, 3
        %s222 = scalar_select %p221, %s24, 3
        %p223 = scmp.lt.s32.totalorder %s25, 0
        %s224 = scalar_select %p223, %s25, 0
        %s225 = smul.addr %s224, 4
        %s226 = smul.addr %s222, 4
        %s227 = sadd.s32 %s225, %s226
        %s228 = smul.addr %s220, 16
        %s229 = sadd.s32 %s227, %s228
        %s230 = smul.addr %s229, 8
        %s231 = scalar_lea.vmem %s0, %s230
        %p232 = pneg %p68
        %p233 = pneg %p65
        %p234 = scmp.lt.s32.totalorder %s23, 1
        %s235 = scalar_select %p234, %s23, 1
        %p236 = scmp.lt.s32.totalorder %s24, 3
        %s237 = scalar_select %p236, %s24, 3
        %p238 = scmp.lt.s32.totalorder %s26, 0
        %s239 = scalar_select %p238, %s26, 0
        %s240 = smul.addr %s237, 4
        %s241 = sadd.s32 %s239, %s240
        %s242 = smul.addr %s235, 16
        %s243 = sadd.s32 %s241, %s242
        %s244 = smul.addr %s243, 8
        %s245 = scalar_lea.vmem %s1, %s244
        %p246 = pneg %p98
        %p247 = pneg %p95
        %p248 = scmp.lt.s32.totalorder %s24, 3
        %s249 = scalar_select %p248, %s24, 3
        %s250 = scalar_lea.vmem %s2, %s249
        %p251 = pneg %p124
        %p252 = pneg %p121
        %p253 = pneg %p156
        %p254 = pneg %p153
        %s255 = sand.u32 %s143, 1
        %s256 = scalar_lea.sflag [#allocation3], %s255
        %s257 = sand.u32 %s143, 1
        %s258 = smul.addr %s257, 8
        %s259 = scalar_lea.vmem [#allocation2], %s258
        %p260 = scmp.lt.s32.totalorder %s23, 1
        %s261 = scalar_select %p260, %s23, 1
        %p262 = scmp.lt.s32.totalorder %s24, 3
        %s263 = scalar_select %p262, %s24, 3
        %p264 = scmp.lt.s32.totalorder %s25, 0
        %s265 = scalar_select %p264, %s25, 0
        %s266 = smul.addr %s265, 4
        %s267 = smul.addr %s263, 4
        %s268 = sadd.s32 %s266, %s267
        %s269 = smul.addr %s261, 16
        %s270 = sadd.s32 %s268, %s269
        %s271 = smul.addr %s270, 8
        %s272 = scalar_lea.vmem %s0, %s271
        %p273 = scmp.lt.s32.totalorder %s23, 1
        %s274 = scalar_select %p273, %s23, 1
        %p275 = scmp.lt.s32.totalorder %s24, 3
        %s276 = scalar_select %p275, %s24, 3
        %p277 = scmp.lt.s32.totalorder %s26, 0
        %s278 = scalar_select %p277, %s26, 0
        %s279 = smul.addr %s276, 4
        %s280 = sadd.s32 %s278, %s279
        %s281 = smul.addr %s274, 16
        %s282 = sadd.s32 %s280, %s281
        %s283 = smul.addr %s282, 8
        %s284 = scalar_lea.vmem %s1, %s283
        %p285 = scmp.lt.s32.totalorder %s24, 3
        %s286 = scalar_select %p285, %s24, 3
        %s287 = scalar_lea.vmem %s2, %s286
        %v288 = vld [vmem:[%s284] sm:$0xff]
        %v289 = vld [vmem:[%s284 + $0x8] sm:$0xff]
        %v290 = vld [vmem:[%s284 + $0x10] sm:$0xff]
        %v291 = vld [vmem:[%s284 + $0x18] sm:$0xff]
        %v292 = vld [vmem:[%s272] sm:$0xff]
        %v293 = vld [vmem:[%s272 + $0x8] sm:$0xff]
        %v294 = vld [vmem:[%s272 + $0x10] sm:$0xff]
        %v295 = vld [vmem:[%s272 + $0x18] sm:$0xff]
        %v296 = vld [vmem:[%s287] sm:$0x1]
        %298 = vset.pattern.permute.xlu0 0
        %299 = vperm.xlu0 %298, %v292
        %v300 = vpop.permute.xlu0 %299
        %303 = vset.pattern.permute.xlu0 0
        %304 = vperm.xlu0 %303, %v293
        %v305 = vpop.permute.xlu0 %304
        %308 = vset.pattern.permute.xlu0 0
        %309 = vperm.xlu0 %308, %v294
        %v310 = vpop.permute.xlu0 %309
        %313 = vset.pattern.permute.xlu0 0
        %314 = vperm.xlu0 %313, %v295
        %v315 = vpop.permute.xlu0 %314
        %v317 = vadd.f32 %v300, %v288
        %v318 = vadd.f32 %v305, %v289
        %v319 = vadd.f32 %v310, %v290
        %v320 = vadd.f32 %v315, %v291
        %v321 = vmul.f32 %v317, 0.5
        %v322 = vmul.f32 %v318, 0.5
        %v323 = vmul.f32 %v319, 0.5
        %v324 = vmul.f32 %v320, 0.5
        %v325 = vmul.f32 %v317, 0.70710677
        %v326 = vmul.f32 %v318, 0.70710677
        %v327 = vmul.f32 %v319, 0.70710677
        %v328 = vmul.f32 %v320, 0.70710677
        %v329 = verf.f32.pop %v325
        %v330 = verf.f32.pop %v326
        %v331 = verf.f32.pop %v327
        %v332 = verf.f32.pop %v328
        %v333 = vadd.f32 %v329, 1.0
        %v334 = vadd.f32 %v330, 1.0
        %v335 = vadd.f32 %v331, 1.0
        %v336 = vadd.f32 %v332, 1.0
        %v337 = vmul.f32 %v321, %v333
        %v338 = vmul.f32 %v322, %v334
        %v339 = vmul.f32 %v323, %v335
        %v340 = vmul.f32 %v324, %v336
        %vm341 = vcmask 261120
        %v343 = vsel %vm341, %v296, 0
        %345 = vmatprep.subr.mxu0 0.0
        %346 = vmatpush1.msra.mxu0 %v337
        %347 = vmatprep.subr.mxu0 0.0
        %348 = vmatpush1.msra.mxu0 %v338
        %349 = vmatprep.subr.mxu0 0.0
        %350 = vmatpush1.msra.mxu0 %v339
        %351 = vmatprep.subr.mxu0 0.0
        %352 = vmatpush1.msra.mxu0 %v340
        %353 = vmatprep.subr.mxu0 0.0
        %354 = vmatpush1.msra.mxu0 0.0
        %355 = vmatprep.subr.mxu0 0.0
        %356 = vmatpush1.msra.mxu0 0.0
        %357 = vmatprep.subr.mxu0 0.0
        %358 = vmatpush1.msra.mxu0 0.0
        %359 = vmatprep.subr.mxu0 0.0
        %360 = vmatpush1.msra.mxu0 0.0
        %361 = vmatprep.subr.mxu0 0.0
        %362 = vmatpush1.msra.mxu0 0.0
        %363 = vmatprep.subr.mxu0 0.0
        %364 = vmatpush1.msra.mxu0 0.0
        %365 = vmatprep.subr.mxu0 0.0
        %366 = vmatpush1.msra.mxu0 0.0
        %367 = vmatprep.subr.mxu0 0.0
        %368 = vmatpush1.msra.mxu0 0.0
        %369 = vmatprep.subr.mxu0 0.0
        %370 = vmatpush1.msra.mxu0 0.0
        %371 = vmatprep.subr.mxu0 0.0
        %372 = vmatpush1.msra.mxu0 0.0
        %373 = vmatprep.subr.mxu0 0.0
        %374 = vmatpush1.msra.mxu0 0.0
        %375 = vmatprep.subr.mxu0 0.0
        %376 = vmatpush1.msra.mxu0 0.0
        %377 = vmatprep.subr.mxu0 0.0
        %378 = vmatpush1.msra.mxu0 0.0
        %379 = vmatprep.subr.mxu0 0.0
        %380 = vmatpush1.msra.mxu0 0.0
        %381 = vmatprep.subr.mxu0 0.0
        %382 = vmatpush1.msra.mxu0 0.0
        %383 = vmatprep.subr.mxu0 0.0
        %384 = vmatpush1.msra.mxu0 0.0
        %385 = vmatprep.subr.mxu0 0.0
        %386 = vmatpush1.msra.mxu0 0.0
        %387 = vmatprep.subr.mxu0 0.0
        %388 = vmatpush1.msra.mxu0 0.0
        %389 = vmatprep.subr.mxu0 0.0
        %390 = vmatpush1.msra.mxu0 0.0
        %391 = vmatprep.subr.mxu0 0.0
        %392 = vmatpush1.msra.mxu0 0.0
        %393 = vmatprep.subr.mxu0 0.0
        %394 = vmatpush1.msra.mxu0 0.0
        %395 = vmatprep.subr.mxu0 0.0
        %396 = vmatpush1.msra.mxu0 0.0
        %397 = vmatprep.subr.mxu0 0.0
        %398 = vmatpush1.msra.mxu0 0.0
        %399 = vmatprep.subr.mxu0 0.0
        %400 = vmatpush1.msra.mxu0 0.0
        %401 = vmatprep.subr.mxu0 0.0
        %402 = vmatpush1.msra.mxu0 0.0
        %403 = vmatprep.subr.mxu0 0.0
        %404 = vmatpush1.msra.mxu0 0.0
        %405 = vmatprep.subr.mxu0 0.0
        %406 = vmatpush1.msra.mxu0 0.0
        %407 = vmatprep.subr.mxu0 0.0
        %408 = vmatpush1.msra.mxu0 0.0
        %409 = vmatprep.mubr.f32.mxu0 0.0
        %410 = vmatmul.mubr.f32.gmra.mrb[0].mxu0 %v343
        %v411 = vpop.f32.mrb[0].mxu0
        %v412 = vadd.f32 0.0, %v411
        %v413 = vpop.f32.mrb[0].mxu0
        %414 = vdwg.mxu0
        %415 = vset.pattern.permute.xlu0 1
        %416 = vperm.xlu0 %415, %v292
        %v417 = vpop.permute.xlu0 %416
        %419 = vset.pattern.permute.xlu0 1
        %420 = vperm.xlu0 %419, %v293
        %v421 = vpop.permute.xlu0 %420
        %423 = vset.pattern.permute.xlu0 1
        %424 = vperm.xlu0 %423, %v294
        %v425 = vpop.permute.xlu0 %424
        %427 = vset.pattern.permute.xlu0 1
        %428 = vperm.xlu0 %427, %v295
        %v429 = vpop.permute.xlu0 %428
        %v431 = vadd.f32 %v417, %v288
        %v432 = vadd.f32 %v421, %v289
        %v433 = vadd.f32 %v425, %v290
        %v434 = vadd.f32 %v429, %v291
        %v435 = vmul.f32 %v431, 0.5
        %v436 = vmul.f32 %v432, 0.5
        %v437 = vmul.f32 %v433, 0.5
        %v438 = vmul.f32 %v434, 0.5
        %v439 = vmul.f32 %v431, 0.70710677
        %v440 = vmul.f32 %v432, 0.70710677
        %v441 = vmul.f32 %v433, 0.70710677
        %v442 = vmul.f32 %v434, 0.70710677
        %v443 = verf.f32.pop %v439
        %v444 = verf.f32.pop %v440
        %v445 = verf.f32.pop %v441
        %v446 = verf.f32.pop %v442
        %v447 = vadd.f32 %v443, 1.0
        %v448 = vadd.f32 %v444, 1.0
        %v449 = vadd.f32 %v445, 1.0
        %v450 = vadd.f32 %v446, 1.0
        %v451 = vmul.f32 %v435, %v447
        %v452 = vmul.f32 %v436, %v448
        %v453 = vmul.f32 %v437, %v449
        %v454 = vmul.f32 %v438, %v450
        %455 = vmatprep.subr.mxu0 0.0
        %456 = vmatpush1.msra.mxu0 %v451
        %457 = vmatprep.subr.mxu0 0.0
        %458 = vmatpush1.msra.mxu0 %v452
        %459 = vmatprep.subr.mxu0 0.0
        %460 = vmatpush1.msra.mxu0 %v453
        %461 = vmatprep.subr.mxu0 0.0
        %462 = vmatpush1.msra.mxu0 %v454
        %463 = vmatprep.subr.mxu0 0.0
        %464 = vmatpush1.msra.mxu0 0.0
        %465 = vmatprep.subr.mxu0 0.0
        %466 = vmatpush1.msra.mxu0 0.0
        %467 = vmatprep.subr.mxu0 0.0
        %468 = vmatpush1.msra.mxu0 0.0
        %469 = vmatprep.subr.mxu0 0.0
        %470 = vmatpush1.msra.mxu0 0.0
        %471 = vmatprep.subr.mxu0 0.0
        %472 = vmatpush1.msra.mxu0 0.0
        %473 = vmatprep.subr.mxu0 0.0
        %474 = vmatpush1.msra.mxu0 0.0
        %475 = vmatprep.subr.mxu0 0.0
        %476 = vmatpush1.msra.mxu0 0.0
        %477 = vmatprep.subr.mxu0 0.0
        %478 = vmatpush1.msra.mxu0 0.0
        %479 = vmatprep.subr.mxu0 0.0
        %480 = vmatpush1.msra.mxu0 0.0
        %481 = vmatprep.subr.mxu0 0.0
        %482 = vmatpush1.msra.mxu0 0.0
        %483 = vmatprep.subr.mxu0 0.0
        %484 = vmatpush1.msra.mxu0 0.0
        %485 = vmatprep.subr.mxu0 0.0
        %486 = vmatpush1.msra.mxu0 0.0
        %487 = vmatprep.subr.mxu0 0.0
        %488 = vmatpush1.msra.mxu0 0.0
        %489 = vmatprep.subr.mxu0 0.0
        %490 = vmatpush1.msra.mxu0 0.0
        %491 = vmatprep.subr.mxu0 0.0
        %492 = vmatpush1.msra.mxu0 0.0
        %493 = vmatprep.subr.mxu0 0.0
        %494 = vmatpush1.msra.mxu0 0.0
        %495 = vmatprep.subr.mxu0 0.0
        %496 = vmatpush1.msra.mxu0 0.0
        %497 = vmatprep.subr.mxu0 0.0
        %498 = vmatpush1.msra.mxu0 0.0
        %499 = vmatprep.subr.mxu0 0.0
        %500 = vmatpush1.msra.mxu0 0.0
        %501 = vmatprep.subr.mxu0 0.0
        %502 = vmatpush1.msra.mxu0 0.0
        %503 = vmatprep.subr.mxu0 0.0
        %504 = vmatpush1.msra.mxu0 0.0
        %505 = vmatprep.subr.mxu0 0.0
        %506 = vmatpush1.msra.mxu0 0.0
        %507 = vmatprep.subr.mxu0 0.0
        %508 = vmatpush1.msra.mxu0 0.0
        %509 = vmatprep.subr.mxu0 0.0
        %510 = vmatpush1.msra.mxu0 0.0
        %511 = vmatprep.subr.mxu0 0.0
        %512 = vmatpush1.msra.mxu0 0.0
        %513 = vmatprep.subr.mxu0 0.0
        %514 = vmatpush1.msra.mxu0 0.0
        %515 = vmatprep.subr.mxu0 0.0
        %516 = vmatpush1.msra.mxu0 0.0
        %517 = vmatprep.subr.mxu0 0.0
        %518 = vmatpush1.msra.mxu0 0.0
        %519 = vmatprep.mubr.f32.mxu0 0.0
        %520 = vmatmul.mubr.f32.gmra.mrb[0].mxu0 %v343
        %v521 = vpop.f32.mrb[0].mxu0
        %v522 = vadd.f32 0.0, %v521
        %v523 = vpop.f32.mrb[0].mxu0
        %524 = vdwg.mxu0
        %525 = vset.pattern.permute.xlu0 2
        %526 = vperm.xlu0 %525, %v292
        %v527 = vpop.permute.xlu0 %526
        %529 = vset.pattern.permute.xlu0 2
        %530 = vperm.xlu0 %529, %v293
        %v531 = vpop.permute.xlu0 %530
        %533 = vset.pattern.permute.xlu0 2
        %534 = vperm.xlu0 %533, %v294
        %v535 = vpop.permute.xlu0 %534
        %537 = vset.pattern.permute.xlu0 2
        %538 = vperm.xlu0 %537, %v295
        %v539 = vpop.permute.xlu0 %538
        %v541 = vadd.f32 %v527, %v288
        %v542 = vadd.f32 %v531, %v289
        %v543 = vadd.f32 %v535, %v290
        %v544 = vadd.f32 %v539, %v291
        %v545 = vmul.f32 %v541, 0.5
        %v546 = vmul.f32 %v542, 0.5
        %v547 = vmul.f32 %v543, 0.5
        %v548 = vmul.f32 %v544, 0.5
        %v549 = vmul.f32 %v541, 0.70710677
        %v550 = vmul.f32 %v542, 0.70710677
        %v551 = vmul.f32 %v543, 0.70710677
        %v552 = vmul.f32 %v544, 0.70710677
        %v553 = verf.f32.pop %v549
        %v554 = verf.f32.pop %v550
        %v555 = verf.f32.pop %v551
        %v556 = verf.f32.pop %v552
        %v557 = vadd.f32 %v553, 1.0
        %v558 = vadd.f32 %v554, 1.0
        %v559 = vadd.f32 %v555, 1.0
        %v560 = vadd.f32 %v556, 1.0
        %v561 = vmul.f32 %v545, %v557
        %v562 = vmul.f32 %v546, %v558
        %v563 = vmul.f32 %v547, %v559
        %v564 = vmul.f32 %v548, %v560
        %565 = vmatprep.subr.mxu0 0.0
        %566 = vmatpush1.msra.mxu0 %v561
        %567 = vmatprep.subr.mxu0 0.0
        %568 = vmatpush1.msra.mxu0 %v562
        %569 = vmatprep.subr.mxu0 0.0
        %570 = vmatpush1.msra.mxu0 %v563
        %571 = vmatprep.subr.mxu0 0.0
        %572 = vmatpush1.msra.mxu0 %v564
        %573 = vmatprep.subr.mxu0 0.0
        %574 = vmatpush1.msra.mxu0 0.0
        %575 = vmatprep.subr.mxu0 0.0
        %576 = vmatpush1.msra.mxu0 0.0
        %577 = vmatprep.subr.mxu0 0.0
        %578 = vmatpush1.msra.mxu0 0.0
        %579 = vmatprep.subr.mxu0 0.0
        %580 = vmatpush1.msra.mxu0 0.0
        %581 = vmatprep.subr.mxu0 0.0
        %582 = vmatpush1.msra.mxu0 0.0
        %583 = vmatprep.subr.mxu0 0.0
        %584 = vmatpush1.msra.mxu0 0.0
        %585 = vmatprep.subr.mxu0 0.0
        %586 = vmatpush1.msra.mxu0 0.0
        %587 = vmatprep.subr.mxu0 0.0
        %588 = vmatpush1.msra.mxu0 0.0
        %589 = vmatprep.subr.mxu0 0.0
        %590 = vmatpush1.msra.mxu0 0.0
        %591 = vmatprep.subr.mxu0 0.0
        %592 = vmatpush1.msra.mxu0 0.0
        %593 = vmatprep.subr.mxu0 0.0
        %594 = vmatpush1.msra.mxu0 0.0
        %595 = vmatprep.subr.mxu0 0.0
        %596 = vmatpush1.msra.mxu0 0.0
        %597 = vmatprep.subr.mxu0 0.0
        %598 = vmatpush1.msra.mxu0 0.0
        %599 = vmatprep.subr.mxu0 0.0
        %600 = vmatpush1.msra.mxu0 0.0
        %601 = vmatprep.subr.mxu0 0.0
        %602 = vmatpush1.msra.mxu0 0.0
        %603 = vmatprep.subr.mxu0 0.0
        %604 = vmatpush1.msra.mxu0 0.0
        %605 = vmatprep.subr.mxu0 0.0
        %606 = vmatpush1.msra.mxu0 0.0
        %607 = vmatprep.subr.mxu0 0.0
        %608 = vmatpush1.msra.mxu0 0.0
        %609 = vmatprep.subr.mxu0 0.0
        %610 = vmatpush1.msra.mxu0 0.0
        %611 = vmatprep.subr.mxu0 0.0
        %612 = vmatpush1.msra.mxu0 0.0
        %613 = vmatprep.subr.mxu0 0.0
        %614 = vmatpush1.msra.mxu0 0.0
        %615 = vmatprep.subr.mxu0 0.0
        %616 = vmatpush1.msra.mxu0 0.0
        %617 = vmatprep.subr.mxu0 0.0
        %618 = vmatpush1.msra.mxu0 0.0
        %619 = vmatprep.subr.mxu0 0.0
        %620 = vmatpush1.msra.mxu0 0.0
        %621 = vmatprep.subr.mxu0 0.0
        %622 = vmatpush1.msra.mxu0 0.0
        %623 = vmatprep.subr.mxu0 0.0
        %624 = vmatpush1.msra.mxu0 0.0
        %625 = vmatprep.subr.mxu0 0.0
        %626 = vmatpush1.msra.mxu0 0.0
        %627 = vmatprep.subr.mxu0 0.0
        %628 = vmatpush1.msra.mxu0 0.0
        %629 = vmatprep.mubr.f32.mxu0 0.0
        %630 = vmatmul.mubr.f32.gmra.mrb[0].mxu0 %v343
        %v631 = vpop.f32.mrb[0].mxu0
        %v632 = vadd.f32 0.0, %v631
        %v633 = vpop.f32.mrb[0].mxu0
        %634 = vdwg.mxu0
        %635 = vset.pattern.permute.xlu0 3
        %636 = vperm.xlu0 %635, %v292
        %v637 = vpop.permute.xlu0 %636
        %639 = vset.pattern.permute.xlu0 3
        %640 = vperm.xlu0 %639, %v293
        %v641 = vpop.permute.xlu0 %640
        %643 = vset.pattern.permute.xlu0 3
        %644 = vperm.xlu0 %643, %v294
        %v645 = vpop.permute.xlu0 %644
        %647 = vset.pattern.permute.xlu0 3
        %648 = vperm.xlu0 %647, %v295
        %v649 = vpop.permute.xlu0 %648
        %v651 = vadd.f32 %v637, %v288
        %v652 = vadd.f32 %v641, %v289
        %v653 = vadd.f32 %v645, %v290
        %v654 = vadd.f32 %v649, %v291
        %v655 = vmul.f32 %v651, 0.5
        %v656 = vmul.f32 %v652, 0.5
        %v657 = vmul.f32 %v653, 0.5
        %v658 = vmul.f32 %v654, 0.5
        %v659 = vmul.f32 %v651, 0.70710677
        %v660 = vmul.f32 %v652, 0.70710677
        %v661 = vmul.f32 %v653, 0.70710677
        %v662 = vmul.f32 %v654, 0.70710677
        %v663 = verf.f32.pop %v659
        %v664 = verf.f32.pop %v660
        %v665 = verf.f32.pop %v661
        %v666 = verf.f32.pop %v662
        %v667 = vadd.f32 %v663, 1.0
        %v668 = vadd.f32 %v664, 1.0
        %v669 = vadd.f32 %v665, 1.0
        %v670 = vadd.f32 %v666, 1.0
        %v671 = vmul.f32 %v655, %v667
        %v672 = vmul.f32 %v656, %v668
        %v673 = vmul.f32 %v657, %v669
        %v674 = vmul.f32 %v658, %v670
        %675 = vmatprep.subr.mxu0 0.0
        %676 = vmatpush1.msra.mxu0 %v671
        %677 = vmatprep.subr.mxu0 0.0
        %678 = vmatpush1.msra.mxu0 %v672
        %679 = vmatprep.subr.mxu0 0.0
        %680 = vmatpush1.msra.mxu0 %v673
        %681 = vmatprep.subr.mxu0 0.0
        %682 = vmatpush1.msra.mxu0 %v674
        %683 = vmatprep.subr.mxu0 0.0
        %684 = vmatpush1.msra.mxu0 0.0
        %685 = vmatprep.subr.mxu0 0.0
        %686 = vmatpush1.msra.mxu0 0.0
        %687 = vmatprep.subr.mxu0 0.0
        %688 = vmatpush1.msra.mxu0 0.0
        %689 = vmatprep.subr.mxu0 0.0
        %690 = vmatpush1.msra.mxu0 0.0
        %691 = vmatprep.subr.mxu0 0.0
        %692 = vmatpush1.msra.mxu0 0.0
        %693 = vmatprep.subr.mxu0 0.0
        %694 = vmatpush1.msra.mxu0 0.0
        %695 = vmatprep.subr.mxu0 0.0
        %696 = vmatpush1.msra.mxu0 0.0
        %697 = vmatprep.subr.mxu0 0.0
        %698 = vmatpush1.msra.mxu0 0.0
        %699 = vmatprep.subr.mxu0 0.0
        %700 = vmatpush1.msra.mxu0 0.0
        %701 = vmatprep.subr.mxu0 0.0
        %702 = vmatpush1.msra.mxu0 0.0
        %703 = vmatprep.subr.mxu0 0.0
        %704 = vmatpush1.msra.mxu0 0.0
        %705 = vmatprep.subr.mxu0 0.0
        %706 = vmatpush1.msra.mxu0 0.0
        %707 = vmatprep.subr.mxu0 0.0
        %708 = vmatpush1.msra.mxu0 0.0
        %709 = vmatprep.subr.mxu0 0.0
        %710 = vmatpush1.msra.mxu0 0.0
        %711 = vmatprep.subr.mxu0 0.0
        %712 = vmatpush1.msra.mxu0 0.0
        %713 = vmatprep.subr.mxu0 0.0
        %714 = vmatpush1.msra.mxu0 0.0
        %715 = vmatprep.subr.mxu0 0.0
        %716 = vmatpush1.msra.mxu0 0.0
        %717 = vmatprep.subr.mxu0 0.0
        %718 = vmatpush1.msra.mxu0 0.0
        %719 = vmatprep.subr.mxu0 0.0
        %720 = vmatpush1.msra.mxu0 0.0
        %721 = vmatprep.subr.mxu0 0.0
        %722 = vmatpush1.msra.mxu0 0.0
        %723 = vmatprep.subr.mxu0 0.0
        %724 = vmatpush1.msra.mxu0 0.0
        %725 = vmatprep.subr.mxu0 0.0
        %726 = vmatpush1.msra.mxu0 0.0
        %727 = vmatprep.subr.mxu0 0.0
        %728 = vmatpush1.msra.mxu0 0.0
        %729 = vmatprep.subr.mxu0 0.0
        %730 = vmatpush1.msra.mxu0 0.0
        %731 = vmatprep.subr.mxu0 0.0
        %732 = vmatpush1.msra.mxu0 0.0
        %733 = vmatprep.subr.mxu0 0.0
        %734 = vmatpush1.msra.mxu0 0.0
        %735 = vmatprep.subr.mxu0 0.0
        %736 = vmatpush1.msra.mxu0 0.0
        %737 = vmatprep.subr.mxu0 0.0
        %738 = vmatpush1.msra.mxu0 0.0
        %739 = vmatprep.mubr.f32.mxu0 0.0
        %740 = vmatmul.mubr.f32.gmra.mrb[0].mxu0 %v343
        %v741 = vpop.f32.mrb[0].mxu0
        %v742 = vadd.f32 0.0, %v741
        %v743 = vpop.f32.mrb[0].mxu0
        %744 = vdwg.mxu0
        %745 = vset.pattern.permute.xlu0 4
        %746 = vperm.xlu0 %745, %v292
        %v747 = vpop.permute.xlu0 %746
        %749 = vset.pattern.permute.xlu0 4
        %750 = vperm.xlu0 %749, %v293
        %v751 = vpop.permute.xlu0 %750
        %753 = vset.pattern.permute.xlu0 4
        %754 = vperm.xlu0 %753, %v294
        %v755 = vpop.permute.xlu0 %754
        %757 = vset.pattern.permute.xlu0 4
        %758 = vperm.xlu0 %757, %v295
        %v759 = vpop.permute.xlu0 %758
        %v761 = vadd.f32 %v747, %v288
        %v762 = vadd.f32 %v751, %v289
        %v763 = vadd.f32 %v755, %v290
        %v764 = vadd.f32 %v759, %v291
        %v765 = vmul.f32 %v761, 0.5
        %v766 = vmul.f32 %v762, 0.5
        %v767 = vmul.f32 %v763, 0.5
        %v768 = vmul.f32 %v764, 0.5
        %v769 = vmul.f32 %v761, 0.70710677
        %v770 = vmul.f32 %v762, 0.70710677
        %v771 = vmul.f32 %v763, 0.70710677
        %v772 = vmul.f32 %v764, 0.70710677
        %v773 = verf.f32.pop %v769
        %v774 = verf.f32.pop %v770
        %v775 = verf.f32.pop %v771
        %v776 = verf.f32.pop %v772
        %v777 = vadd.f32 %v773, 1.0
        %v778 = vadd.f32 %v774, 1.0
        %v779 = vadd.f32 %v775, 1.0
        %v780 = vadd.f32 %v776, 1.0
        %v781 = vmul.f32 %v765, %v777
        %v782 = vmul.f32 %v766, %v778
        %v783 = vmul.f32 %v767, %v779
        %v784 = vmul.f32 %v768, %v780
        %785 = vmatprep.subr.mxu0 0.0
        %786 = vmatpush1.msra.mxu0 %v781
        %787 = vmatprep.subr.mxu0 0.0
        %788 = vmatpush1.msra.mxu0 %v782
        %789 = vmatprep.subr.mxu0 0.0
        %790 = vmatpush1.msra.mxu0 %v783
        %791 = vmatprep.subr.mxu0 0.0
        %792 = vmatpush1.msra.mxu0 %v784
        %793 = vmatprep.subr.mxu0 0.0
        %794 = vmatpush1.msra.mxu0 0.0
        %795 = vmatprep.subr.mxu0 0.0
        %796 = vmatpush1.msra.mxu0 0.0
        %797 = vmatprep.subr.mxu0 0.0
        %798 = vmatpush1.msra.mxu0 0.0
        %799 = vmatprep.subr.mxu0 0.0
        %800 = vmatpush1.msra.mxu0 0.0
        %801 = vmatprep.subr.mxu0 0.0
        %802 = vmatpush1.msra.mxu0 0.0
        %803 = vmatprep.subr.mxu0 0.0
        %804 = vmatpush1.msra.mxu0 0.0
        %805 = vmatprep.subr.mxu0 0.0
        %806 = vmatpush1.msra.mxu0 0.0
        %807 = vmatprep.subr.mxu0 0.0
        %808 = vmatpush1.msra.mxu0 0.0
        %809 = vmatprep.subr.mxu0 0.0
        %810 = vmatpush1.msra.mxu0 0.0
        %811 = vmatprep.subr.mxu0 0.0
        %812 = vmatpush1.msra.mxu0 0.0
        %813 = vmatprep.subr.mxu0 0.0
        %814 = vmatpush1.msra.mxu0 0.0
        %815 = vmatprep.subr.mxu0 0.0
        %816 = vmatpush1.msra.mxu0 0.0
        %817 = vmatprep.subr.mxu0 0.0
        %818 = vmatpush1.msra.mxu0 0.0
        %819 = vmatprep.subr.mxu0 0.0
        %820 = vmatpush1.msra.mxu0 0.0
        %821 = vmatprep.subr.mxu0 0.0
        %822 = vmatpush1.msra.mxu0 0.0
        %823 = vmatprep.subr.mxu0 0.0
        %824 = vmatpush1.msra.mxu0 0.0
        %825 = vmatprep.subr.mxu0 0.0
        %826 = vmatpush1.msra.mxu0 0.0
        %827 = vmatprep.subr.mxu0 0.0
        %828 = vmatpush1.msra.mxu0 0.0
        %829 = vmatprep.subr.mxu0 0.0
        %830 = vmatpush1.msra.mxu0 0.0
        %831 = vmatprep.subr.mxu0 0.0
        %832 = vmatpush1.msra.mxu0 0.0
        %833 = vmatprep.subr.mxu0 0.0
        %834 = vmatpush1.msra.mxu0 0.0
        %835 = vmatprep.subr.mxu0 0.0
        %836 = vmatpush1.msra.mxu0 0.0
        %837 = vmatprep.subr.mxu0 0.0
        %838 = vmatpush1.msra.mxu0 0.0
        %839 = vmatprep.subr.mxu0 0.0
        %840 = vmatpush1.msra.mxu0 0.0
        %841 = vmatprep.subr.mxu0 0.0
        %842 = vmatpush1.msra.mxu0 0.0
        %843 = vmatprep.subr.mxu0 0.0
        %844 = vmatpush1.msra.mxu0 0.0
        %845 = vmatprep.subr.mxu0 0.0
        %846 = vmatpush1.msra.mxu0 0.0
        %847 = vmatprep.subr.mxu0 0.0
        %848 = vmatpush1.msra.mxu0 0.0
        %849 = vmatprep.mubr.f32.mxu0 0.0
        %850 = vmatmul.mubr.f32.gmra.mrb[0].mxu0 %v343
        %v851 = vpop.f32.mrb[0].mxu0
        %v852 = vadd.f32 0.0, %v851
        %v853 = vpop.f32.mrb[0].mxu0
        %854 = vdwg.mxu0
        %855 = vset.pattern.permute.xlu0 5
        %856 = vperm.xlu0 %855, %v292
        %v857 = vpop.permute.xlu0 %856
        %859 = vset.pattern.permute.xlu0 5
        %860 = vperm.xlu0 %859, %v293
        %v861 = vpop.permute.xlu0 %860
        %863 = vset.pattern.permute.xlu0 5
        %864 = vperm.xlu0 %863, %v294
        %v865 = vpop.permute.xlu0 %864
        %867 = vset.pattern.permute.xlu0 5
        %868 = vperm.xlu0 %867, %v295
        %v869 = vpop.permute.xlu0 %868
        %v871 = vadd.f32 %v857, %v288
        %v872 = vadd.f32 %v861, %v289
        %v873 = vadd.f32 %v865, %v290
        %v874 = vadd.f32 %v869, %v291
        %v875 = vmul.f32 %v871, 0.5
        %v876 = vmul.f32 %v872, 0.5
        %v877 = vmul.f32 %v873, 0.5
        %v878 = vmul.f32 %v874, 0.5
        %v879 = vmul.f32 %v871, 0.70710677
        %v880 = vmul.f32 %v872, 0.70710677
        %v881 = vmul.f32 %v873, 0.70710677
        %v882 = vmul.f32 %v874, 0.70710677
        %v883 = verf.f32.pop %v879
        %v884 = verf.f32.pop %v880
        %v885 = verf.f32.pop %v881
        %v886 = verf.f32.pop %v882
        %v887 = vadd.f32 %v883, 1.0
        %v888 = vadd.f32 %v884, 1.0
        %v889 = vadd.f32 %v885, 1.0
        %v890 = vadd.f32 %v886, 1.0
        %v891 = vmul.f32 %v875, %v887
        %v892 = vmul.f32 %v876, %v888
        %v893 = vmul.f32 %v877, %v889
        %v894 = vmul.f32 %v878, %v890
        %895 = vmatprep.subr.mxu0 0.0
        %896 = vmatpush1.msra.mxu0 %v891
        %897 = vmatprep.subr.mxu0 0.0
        %898 = vmatpush1.msra.mxu0 %v892
        %899 = vmatprep.subr.mxu0 0.0
        %900 = vmatpush1.msra.mxu0 %v893
        %901 = vmatprep.subr.mxu0 0.0
        %902 = vmatpush1.msra.mxu0 %v894
        %903 = vmatprep.subr.mxu0 0.0
        %904 = vmatpush1.msra.mxu0 0.0
        %905 = vmatprep.subr.mxu0 0.0
        %906 = vmatpush1.msra.mxu0 0.0
        %907 = vmatprep.subr.mxu0 0.0
        %908 = vmatpush1.msra.mxu0 0.0
        %909 = vmatprep.subr.mxu0 0.0
        %910 = vmatpush1.msra.mxu0 0.0
        %911 = vmatprep.subr.mxu0 0.0
        %912 = vmatpush1.msra.mxu0 0.0
        %913 = vmatprep.subr.mxu0 0.0
        %914 = vmatpush1.msra.mxu0 0.0
        %915 = vmatprep.subr.mxu0 0.0
        %916 = vmatpush1.msra.mxu0 0.0
        %917 = vmatprep.subr.mxu0 0.0
        %918 = vmatpush1.msra.mxu0 0.0
        %919 = vmatprep.subr.mxu0 0.0
        %920 = vmatpush1.msra.mxu0 0.0
        %921 = vmatprep.subr.mxu0 0.0
        %922 = vmatpush1.msra.mxu0 0.0
        %923 = vmatprep.subr.mxu0 0.0
        %924 = vmatpush1.msra.mxu0 0.0
        %925 = vmatprep.subr.mxu0 0.0
        %926 = vmatpush1.msra.mxu0 0.0
        %927 = vmatprep.subr.mxu0 0.0
        %928 = vmatpush1.msra.mxu0 0.0
        %929 = vmatprep.subr.mxu0 0.0
        %930 = vmatpush1.msra.mxu0 0.0
        %931 = vmatprep.subr.mxu0 0.0
        %932 = vmatpush1.msra.mxu0 0.0
        %933 = vmatprep.subr.mxu0 0.0
        %934 = vmatpush1.msra.mxu0 0.0
        %935 = vmatprep.subr.mxu0 0.0
        %936 = vmatpush1.msra.mxu0 0.0
        %937 = vmatprep.subr.mxu0 0.0
        %938 = vmatpush1.msra.mxu0 0.0
        %939 = vmatprep.subr.mxu0 0.0
        %940 = vmatpush1.msra.mxu0 0.0
        %941 = vmatprep.subr.mxu0 0.0
        %942 = vmatpush1.msra.mxu0 0.0
        %943 = vmatprep.subr.mxu0 0.0
        %944 = vmatpush1.msra.mxu0 0.0
        %945 = vmatprep.subr.mxu0 0.0
        %946 = vmatpush1.msra.mxu0 0.0
        %947 = vmatprep.subr.mxu0 0.0
        %948 = vmatpush1.msra.mxu0 0.0
        %949 = vmatprep.subr.mxu0 0.0
        %950 = vmatpush1.msra.mxu0 0.0
        %951 = vmatprep.subr.mxu0 0.0
        %952 = vmatpush1.msra.mxu0 0.0
        %953 = vmatprep.subr.mxu0 0.0
        %954 = vmatpush1.msra.mxu0 0.0
        %955 = vmatprep.subr.mxu0 0.0
        %956 = vmatpush1.msra.mxu0 0.0
        %957 = vmatprep.subr.mxu0 0.0
        %958 = vmatpush1.msra.mxu0 0.0
        %959 = vmatprep.mubr.f32.mxu0 0.0
        %960 = vmatmul.mubr.f32.gmra.mrb[0].mxu0 %v343
        %v961 = vpop.f32.mrb[0].mxu0
        %v962 = vadd.f32 0.0, %v961
        %v963 = vpop.f32.mrb[0].mxu0
        %964 = vdwg.mxu0
        %965 = vset.pattern.permute.xlu0 6
        %966 = vperm.xlu0 %965, %v292
        %v967 = vpop.permute.xlu0 %966
        %969 = vset.pattern.permute.xlu0 6
        %970 = vperm.xlu0 %969, %v293
        %v971 = vpop.permute.xlu0 %970
        %973 = vset.pattern.permute.xlu0 6
        %974 = vperm.xlu0 %973, %v294
        %v975 = vpop.permute.xlu0 %974
        %977 = vset.pattern.permute.xlu0 6
        %978 = vperm.xlu0 %977, %v295
        %v979 = vpop.permute.xlu0 %978
        %v981 = vadd.f32 %v967, %v288
        %v982 = vadd.f32 %v971, %v289
        %v983 = vadd.f32 %v975, %v290
        %v984 = vadd.f32 %v979, %v291
        %v985 = vmul.f32 %v981, 0.5
        %v986 = vmul.f32 %v982, 0.5
        %v987 = vmul.f32 %v983, 0.5
        %v988 = vmul.f32 %v984, 0.5
        %v989 = vmul.f32 %v981, 0.70710677
        %v990 = vmul.f32 %v982, 0.70710677
        %v991 = vmul.f32 %v983, 0.70710677
        %v992 = vmul.f32 %v984, 0.70710677
        %v993 = verf.f32.pop %v989
        %v994 = verf.f32.pop %v990
        %v995 = verf.f32.pop %v991
        %v996 = verf.f32.pop %v992
        %v997 = vadd.f32 %v993, 1.0
        %v998 = vadd.f32 %v994, 1.0
        %v999 = vadd.f32 %v995, 1.0
        %v1000 = vadd.f32 %v996, 1.0
        %v1001 = vmul.f32 %v985, %v997
        %v1002 = vmul.f32 %v986, %v998
        %v1003 = vmul.f32 %v987, %v999
        %v1004 = vmul.f32 %v988, %v1000
        %1005 = vmatprep.subr.mxu0 0.0
        %1006 = vmatpush1.msra.mxu0 %v1001
        %1007 = vmatprep.subr.mxu0 0.0
        %1008 = vmatpush1.msra.mxu0 %v1002
        %1009 = vmatprep.subr.mxu0 0.0
        %1010 = vmatpush1.msra.mxu0 %v1003
        %1011 = vmatprep.subr.mxu0 0.0
        %1012 = vmatpush1.msra.mxu0 %v1004
        %1013 = vmatprep.subr.mxu0 0.0
        %1014 = vmatpush1.msra.mxu0 0.0
        %1015 = vmatprep.subr.mxu0 0.0
        %1016 = vmatpush1.msra.mxu0 0.0
        %1017 = vmatprep.subr.mxu0 0.0
        %1018 = vmatpush1.msra.mxu0 0.0
        %1019 = vmatprep.subr.mxu0 0.0
        %1020 = vmatpush1.msra.mxu0 0.0
        %1021 = vmatprep.subr.mxu0 0.0
        %1022 = vmatpush1.msra.mxu0 0.0
        %1023 = vmatprep.subr.mxu0 0.0
        %1024 = vmatpush1.msra.mxu0 0.0
        %1025 = vmatprep.subr.mxu0 0.0
        %1026 = vmatpush1.msra.mxu0 0.0
        %1027 = vmatprep.subr.mxu0 0.0
        %1028 = vmatpush1.msra.mxu0 0.0
        %1029 = vmatprep.subr.mxu0 0.0
        %1030 = vmatpush1.msra.mxu0 0.0
        %1031 = vmatprep.subr.mxu0 0.0
        %1032 = vmatpush1.msra.mxu0 0.0
        %1033 = vmatprep.subr.mxu0 0.0
        %1034 = vmatpush1.msra.mxu0 0.0
        %1035 = vmatprep.subr.mxu0 0.0
        %1036 = vmatpush1.msra.mxu0 0.0
        %1037 = vmatprep.subr.mxu0 0.0
        %1038 = vmatpush1.msra.mxu0 0.0
        %1039 = vmatprep.subr.mxu0 0.0
        %1040 = vmatpush1.msra.mxu0 0.0
        %1041 = vmatprep.subr.mxu0 0.0
        %1042 = vmatpush1.msra.mxu0 0.0
        %1043 = vmatprep.subr.mxu0 0.0
        %1044 = vmatpush1.msra.mxu0 0.0
        %1045 = vmatprep.subr.mxu0 0.0
        %1046 = vmatpush1.msra.mxu0 0.0
        %1047 = vmatprep.subr.mxu0 0.0
        %1048 = vmatpush1.msra.mxu0 0.0
        %1049 = vmatprep.subr.mxu0 0.0
        %1050 = vmatpush1.msra.mxu0 0.0
        %1051 = vmatprep.subr.mxu0 0.0
        %1052 = vmatpush1.msra.mxu0 0.0
        %1053 = vmatprep.subr.mxu0 0.0
        %1054 = vmatpush1.msra.mxu0 0.0
        %1055 = vmatprep.subr.mxu0 0.0
        %1056 = vmatpush1.msra.mxu0 0.0
        %1057 = vmatprep.subr.mxu0 0.0
        %1058 = vmatpush1.msra.mxu0 0.0
        %1059 = vmatprep.subr.mxu0 0.0
        %1060 = vmatpush1.msra.mxu0 0.0
        %1061 = vmatprep.subr.mxu0 0.0
        %1062 = vmatpush1.msra.mxu0 0.0
        %1063 = vmatprep.subr.mxu0 0.0
        %1064 = vmatpush1.msra.mxu0 0.0
        %1065 = vmatprep.subr.mxu0 0.0
        %1066 = vmatpush1.msra.mxu0 0.0
        %1067 = vmatprep.subr.mxu0 0.0
        %1068 = vmatpush1.msra.mxu0 0.0
        %1069 = vmatprep.mubr.f32.mxu0 0.0
        %1070 = vmatmul.mubr.f32.gmra.mrb[0].mxu0 %v343
        %v1071 = vpop.f32.mrb[0].mxu0
        %v1072 = vadd.f32 0.0, %v1071
        %v1073 = vpop.f32.mrb[0].mxu0
        %1074 = vdwg.mxu0
        %1075 = vset.pattern.permute.xlu0 7
        %1076 = vperm.xlu0 %1075, %v292
        %v1077 = vpop.permute.xlu0 %1076
        %1079 = vset.pattern.permute.xlu0 7
        %1080 = vperm.xlu0 %1079, %v293
        %v1081 = vpop.permute.xlu0 %1080
        %1083 = vset.pattern.permute.xlu0 7
        %1084 = vperm.xlu0 %1083, %v294
        %v1085 = vpop.permute.xlu0 %1084
        %1087 = vset.pattern.permute.xlu0 7
        %1088 = vperm.xlu0 %1087, %v295
        %v1089 = vpop.permute.xlu0 %1088
        %v1091 = vadd.f32 %v1077, %v288
        %v1092 = vadd.f32 %v1081, %v289
        %v1093 = vadd.f32 %v1085, %v290
        %v1094 = vadd.f32 %v1089, %v291
        %v1095 = vmul.f32 %v1091, 0.5
        %v1096 = vmul.f32 %v1092, 0.5
        %v1097 = vmul.f32 %v1093, 0.5
        %v1098 = vmul.f32 %v1094, 0.5
        %v1099 = vmul.f32 %v1091, 0.70710677
        %v1100 = vmul.f32 %v1092, 0.70710677
        %v1101 = vmul.f32 %v1093, 0.70710677
        %v1102 = vmul.f32 %v1094, 0.70710677
        %v1103 = verf.f32.pop %v1099
        %v1104 = verf.f32.pop %v1100
        %v1105 = verf.f32.pop %v1101
        %v1106 = verf.f32.pop %v1102
        %v1107 = vadd.f32 %v1103, 1.0
        %v1108 = vadd.f32 %v1104, 1.0
        %v1109 = vadd.f32 %v1105, 1.0
        %v1110 = vadd.f32 %v1106, 1.0
        %v1111 = vmul.f32 %v1095, %v1107
        %v1112 = vmul.f32 %v1096, %v1108
        %v1113 = vmul.f32 %v1097, %v1109
        %v1114 = vmul.f32 %v1098, %v1110
        %1115 = vmatprep.subr.mxu0 0.0
        %1116 = vmatpush1.msra.mxu0 %v1111
        %1117 = vmatprep.subr.mxu0 0.0
        %1118 = vmatpush1.msra.mxu0 %v1112
        %1119 = vmatprep.subr.mxu0 0.0
        %1120 = vmatpush1.msra.mxu0 %v1113
        %1121 = vmatprep.subr.mxu0 0.0
        %1122 = vmatpush1.msra.mxu0 %v1114
        %1123 = vmatprep.subr.mxu0 0.0
        %1124 = vmatpush1.msra.mxu0 0.0
        %1125 = vmatprep.subr.mxu0 0.0
        %1126 = vmatpush1.msra.mxu0 0.0
        %1127 = vmatprep.subr.mxu0 0.0
        %1128 = vmatpush1.msra.mxu0 0.0
        %1129 = vmatprep.subr.mxu0 0.0
        %1130 = vmatpush1.msra.mxu0 0.0
        %1131 = vmatprep.subr.mxu0 0.0
        %1132 = vmatpush1.msra.mxu0 0.0
        %1133 = vmatprep.subr.mxu0 0.0
        %1134 = vmatpush1.msra.mxu0 0.0
        %1135 = vmatprep.subr.mxu0 0.0
        %1136 = vmatpush1.msra.mxu0 0.0
        %1137 = vmatprep.subr.mxu0 0.0
        %1138 = vmatpush1.msra.mxu0 0.0
        %1139 = vmatprep.subr.mxu0 0.0
        %1140 = vmatpush1.msra.mxu0 0.0
        %1141 = vmatprep.subr.mxu0 0.0
        %1142 = vmatpush1.msra.mxu0 0.0
        %1143 = vmatprep.subr.mxu0 0.0
        %1144 = vmatpush1.msra.mxu0 0.0
        %1145 = vmatprep.subr.mxu0 0.0
        %1146 = vmatpush1.msra.mxu0 0.0
        %1147 = vmatprep.subr.mxu0 0.0
        %1148 = vmatpush1.msra.mxu0 0.0
        %1149 = vmatprep.subr.mxu0 0.0
        %1150 = vmatpush1.msra.mxu0 0.0
        %1151 = vmatprep.subr.mxu0 0.0
        %1152 = vmatpush1.msra.mxu0 0.0
        %1153 = vmatprep.subr.mxu0 0.0
        %1154 = vmatpush1.msra.mxu0 0.0
        %1155 = vmatprep.subr.mxu0 0.0
        %1156 = vmatpush1.msra.mxu0 0.0
        %1157 = vmatprep.subr.mxu0 0.0
        %1158 = vmatpush1.msra.mxu0 0.0
        %1159 = vmatprep.subr.mxu0 0.0
        %1160 = vmatpush1.msra.mxu0 0.0
        %1161 = vmatprep.subr.mxu0 0.0
        %1162 = vmatpush1.msra.mxu0 0.0
        %1163 = vmatprep.subr.mxu0 0.0
        %1164 = vmatpush1.msra.mxu0 0.0
        %1165 = vmatprep.subr.mxu0 0.0
        %1166 = vmatpush1.msra.mxu0 0.0
        %1167 = vmatprep.subr.mxu0 0.0
        %1168 = vmatpush1.msra.mxu0 0.0
        %1169 = vmatprep.subr.mxu0 0.0
        %1170 = vmatpush1.msra.mxu0 0.0
        %1171 = vmatprep.subr.mxu0 0.0
        %1172 = vmatpush1.msra.mxu0 0.0
        %1173 = vmatprep.subr.mxu0 0.0
        %1174 = vmatpush1.msra.mxu0 0.0
        %1175 = vmatprep.subr.mxu0 0.0
        %1176 = vmatpush1.msra.mxu0 0.0
        %1177 = vmatprep.subr.mxu0 0.0
        %1178 = vmatpush1.msra.mxu0 0.0
        %1179 = vmatprep.mubr.f32.mxu0 0.0
        %1180 = vmatmul.mubr.f32.gmra.mrb[0].mxu0 %v343
        %v1181 = vpop.f32.mrb[0].mxu0
        %v1182 = vadd.f32 0.0, %v1181
        %v1183 = vpop.f32.mrb[0].mxu0
        %1184 = vdwg.mxu0
        %1185 = vst [vmem:[%s259] sm:$0x1] %v412
        %1186 = vst [vmem:[%s259 + $0x1] sm:$0x1] %v522
        %1187 = vst [vmem:[%s259 + $0x2] sm:$0x1] %v632
        %1188 = vst [vmem:[%s259 + $0x3] sm:$0x1] %v742
        %1189 = vst [vmem:[%s259 + $0x4] sm:$0x1] %v852
        %1190 = vst [vmem:[%s259 + $0x5] sm:$0x1] %v962
        %1191 = vst [vmem:[%s259 + $0x6] sm:$0x1] %v1072
        %1192 = vst [vmem:[%s259 + $0x7] sm:$0x1] %v1182
        %s1193 = sand.u32 %s143, 1
        %s1194 = scalar_lea.sflag [#allocation3], %s1193
        %s1195 = sand.u32 %s143, 1
        %s1196 = smul.addr %s1195, 8
        %s1197 = scalar_lea.vmem [#allocation2], %s1196
        // Predicated region
        $region33: #{tpu_custom_call.1} parent=31 // pred_check
          %p1198 = pneg %p153
        $region34: #{tpu_custom_call.1} parent=31 // pred_check_branch
          %1200 = sbr.rel (%p1198) target = $region36
        $region35: #{tpu_custom_call.1} parent=31 // pred_region
          %s1202 = ssub.s32 128, 128
          %1203 = vsyncadd %s1194, %s1202
          %s1204 = sadd.s32 %s26, %s25
          %s1205 = sadd.s32 %s1204, %s24
          %s1206 = smul.addr %s23, 4
          %s1207 = sadd.s32 %s1205, %s1206
          %s1208 = smul.addr %s1207, 128
          %s1209 = scalar_lea.hbm %s3, %s1208
          %s1211 = sshll.u32 %s1197, 4
          %s1212 = int_to_ptr.vmem [resolvable:$true] %s1211
          %1214 = dma.vmem_to_hbm [thread:$0]  %s1212, 128, %s1209, %s1194
        $region36: #{tpu_custom_call.1} parent=31 // pred_fallthru
          _
      $region32: #{tpu_custom_call.1} parent=5 // pred_fallthru
        _
      %p1215 = scmp.le.s32.totalorder 2, %s12
      // Predicated region
      $region37: #{tpu_custom_call.1} parent=5 // pred_check
        %p1216 = pneg %p1215
      $region38: #{tpu_custom_call.1} parent=5 // pred_check_branch
        %1218 = sbr.rel (%p1216) target = $region40
      $region39: #{tpu_custom_call.1} parent=5 // pred_region
        %s1219 = ssub.s32 %s12, 2
        // Predicated region
        $region41: #{tpu_custom_call.1} parent=39 // pred_check
          %p1220 = pneg %p159
        $region42: #{tpu_custom_call.1} parent=39 // pred_check_branch
          %1222 = sbr.rel (%p1220) target = $region44
        $region43: #{tpu_custom_call.1} parent=39 // pred_region
          %s1223 = sand.u32 %s144, 1
          %s1224 = scalar_lea.sflag [#allocation3], %s1223
          %s1225 = sand.u32 %s144, 1
          %s1226 = smul.addr %s1225, 8
          %s1227 = scalar_lea.vmem [#allocation2], %s1226
          %1228 = dma.done %s1224, 128
        $region44: #{tpu_custom_call.1} parent=39 // pred_fallthru
          _
      $region40: #{tpu_custom_call.1} parent=5 // pred_fallthru
        _
    $region6: #{tpu_custom_call.1} parent=1 // loop_footer
      %s16 = sadd.s32 1, %s12
    $region7: #{tpu_custom_call.1} parent=1 // loop_footer_branch
      %11 = sbr.rel target = $region3
    $region8: #{tpu_custom_call.1} parent=1 // loop_exit
      _
    %1229 = vsyncpa [#allocation3], 1
    %s1230 = scalar_lea.sflag [#allocation3], 1
    %1231 = vsyncpa %s1230, 1

</llo_original>
